<compile_context>
chip_gen: v5e
topology: v5e:2x2
jax: 0.10.0
libtpu: 0.0.40
codegen_flags: <defaults>
</compile_context>

<pallas_src>
import functools

import jax
import jax.numpy as jnp
from jax.experimental import pallas as pl
from jax.experimental.pallas import tpu as pltpu

IN_DIM = 729
HID_DIM = 200
LANE = 128
IN_PAD = 768    # 6 * 128
HID_PAD = 256   # 2 * 128


def _round_up(x, m):
    return ((x + m - 1) // m) * m


def _vae_kernel(x_ref, eps_ref,
                w1_ref, b1_ref,
                wenc_ref, benc_ref,
                w3_ref, b3_ref,
                w4_ref, b4_ref,
                recon_ref, mu_ref, logvar_ref,
                xpad_ref):
    lp = wenc_ref.shape[1] // 2   # padded latent dim
    l = mu_ref.shape[1]           # logical latent dim
    in_dim = x_ref.shape[1]       # 729

    # In-kernel cast + lane-pad of x (avoids a wrapper-side pad/cast HBM pass).
    xpad_ref[...] = jnp.zeros_like(xpad_ref)
    xpad_ref[:, :in_dim] = x_ref[...].astype(jnp.bfloat16)
    x = xpad_ref[...]

    # encode: h1 = relu(x @ W1 + b1)   (bf16 x bf16 -> f32 accumulate on MXU)
    h1 = jnp.dot(x, w1_ref[...], preferred_element_type=jnp.float32) + b1_ref[...]
    h1 = jnp.maximum(h1, 0.0)

    # fused encoder heads: [mu | logvar] = h1 @ [W21 | W22] + [b21 | b22]
    ml = jnp.dot(h1.astype(jnp.bfloat16), wenc_ref[...],
                 preferred_element_type=jnp.float32) + benc_ref[...]
    mu = ml[:, :lp]
    logvar = ml[:, lp:]

    # reparameterize: z = mu + eps * exp(0.5 * logvar)
    std = jnp.exp(0.5 * logvar)
    z = mu + eps_ref[...].astype(jnp.float32) * std

    # decode: sigmoid(relu(z @ W3 + b3) @ W4 + b4)
    h3 = jnp.dot(z.astype(jnp.bfloat16), w3_ref[...],
                 preferred_element_type=jnp.float32) + b3_ref[...]
    h3 = jnp.maximum(h3, 0.0)
    logits = jnp.dot(h3.astype(jnp.bfloat16), w4_ref[...],
                     preferred_element_type=jnp.float32) + b4_ref[...]

    # sigmoid(x) == 0.5 * (tanh(0.5 * x) + 1): a single EUP op; the muls/add ride the VPU.
    recon = 0.5 * (jnp.tanh(0.5 * logits) + 1.0)

    recon_ref[...] = recon[:, :in_dim].astype(recon_ref.dtype)
    mu_ref[...] = mu[:, :l]
    logvar_ref[...] = logvar[:, :l]


def init_params(key, latent_dim):
    """Logical (unpadded, f32) params mirroring nn.Linear U(-1/sqrt(fan_in), ...).
    Weights are stored (in, out) so the kernel computes x @ W; biases are (1, out)."""
    def linear(k, fan_in, fan_out):
        kw, kb = jax.random.split(k)
        bound = 1.0 / jnp.sqrt(float(fan_in))
        w = jax.random.uniform(kw, (fan_in, fan_out), jnp.float32, -bound, bound)
        b = jax.random.uniform(kb, (1, fan_out), jnp.float32, -bound, bound)
        return w, b

    k1, k21, k22, k3, k4 = jax.random.split(key, 5)
    w1, b1 = linear(k1, IN_DIM, HID_DIM)         # fc1
    w21, b21 = linear(k21, HID_DIM, latent_dim)  # fc21
    w22, b22 = linear(k22, HID_DIM, latent_dim)  # fc22
    w3, b3 = linear(k3, latent_dim, HID_DIM)     # fc3
    w4, b4 = linear(k4, HID_DIM, IN_DIM)         # fc4
    return (w1, b1, w21, b21, w22, b22, w3, b3, w4, b4)


def pack_params(params, latent_dim):
    """Zero-pad to lane multiples, fuse fc21/fc22, cast weights to bf16 (biases stay f32)."""
    w1, b1, w21, b21, w22, b22, w3, b3, w4, b4 = params
    lp = _round_up(latent_dim, LANE)

    def pad2(a, r, c):
        return jnp.pad(a, ((0, r - a.shape[0]), (0, c - a.shape[1])))

    w1p = pad2(w1, IN_PAD, HID_PAD).astype(jnp.bfloat16)
    b1p = pad2(b1, 1, HID_PAD).astype(jnp.float32)
    wenc = jnp.concatenate(
        [pad2(w21, HID_PAD, lp), pad2(w22, HID_PAD, lp)], axis=1).astype(jnp.bfloat16)
    benc = jnp.concatenate(
        [pad2(b21, 1, lp), pad2(b22, 1, lp)], axis=1).astype(jnp.float32)
    w3p = pad2(w3, lp, HID_PAD).astype(jnp.bfloat16)
    b3p = pad2(b3, 1, HID_PAD).astype(jnp.float32)
    w4p = pad2(w4, HID_PAD, IN_PAD).astype(jnp.bfloat16)
    b4p = pad2(b4, 1, IN_PAD).astype(jnp.float32)
    return (w1p, b1p, wenc, benc, w3p, b3p, w4p, b4p)


@functools.partial(jax.jit, static_argnames=("latent_dim",))
def vae_forward(x, eps, packed_params, latent_dim):
    """x: (B, 27, 27) or (B, 729); eps: (B, latent_dim).
    Returns (recon (B, 729) bf16, mu (B, L) f32, logvar (B, L) f32)."""
    w1p, b1p, wenc, benc, w3p, b3p, w4p, b4p = packed_params
    L = latent_dim
    Lp = wenc.shape[1] // 2

    x2d = x.reshape(-1, IN_DIM)
    B = x2d.shape[0]

    # Batch tile: as large as comfortably fits VMEM (cap 512 -> safe on v7x's 64 MiB),
    # but small enough that the grid has >= 2 steps when B allows it, so the "parallel"
    # axis can shard across both v7x TensorCores.
    tile_b = max(8, min(512, _round_up(max(1, (B + 1) // 2), 8)))
    grid = (pl.cdiv(B, tile_b),)

    # eps: bf16 + zero lane-pad to Lp (tiny; keeps the padded latent columns exactly 0).
    ep = jnp.pad(eps.astype(jnp.bfloat16), ((0, 0), (0, Lp - L)))

    def act_spec(d):
        return pl.BlockSpec((tile_b, d), lambda i: (i, 0))

    def resident_spec(a):
        return pl.BlockSpec(a.shape, lambda i: (0, 0))

    in_specs = [
        act_spec(IN_DIM),        # x tile (f32, logical 729-wide)
        act_spec(Lp),            # eps tile (bf16)
        resident_spec(w1p), resident_spec(b1p),
        resident_spec(wenc), resident_spec(benc),
        resident_spec(w3p), resident_spec(b3p),
        resident_spec(w4p), resident_spec(b4p),
    ]
    out_shape = (
        jax.ShapeDtypeStruct((B, IN_DIM), jnp.bfloat16),   # recon
        jax.ShapeDtypeStruct((B, L), jnp.float32),         # mu
        jax.ShapeDtypeStruct((B, L), jnp.float32),         # logvar
    )
    out_specs = (act_spec(IN_DIM), act_spec(L), act_spec(L))

    # Advisory cost estimate for XLA's scheduler.
    flops = 2 * B * (IN_PAD * HID_PAD + HID_PAD * 2 * Lp
                     + Lp * HID_PAD + HID_PAD * IN_PAD)
    transcendentals = B * (Lp + IN_PAD)
    param_bytes = sum(a.size * a.dtype.itemsize
                      for a in (w1p, b1p, wenc, benc, w3p, b3p, w4p, b4p))
    io_bytes = (x2d.size * x2d.dtype.itemsize + ep.size * 2
                + B * IN_DIM * 2 + 2 * B * L * 4)

    recon, mu, logvar = pl.pallas_call(
        _vae_kernel,
        grid=grid,
        in_specs=in_specs,
        out_specs=out_specs,
        out_shape=out_shape,
        scratch_shapes=[pltpu.VMEM((tile_b, IN_PAD), jnp.bfloat16)],
        compiler_params=pltpu.CompilerParams(
            dimension_semantics=("parallel",),
            vmem_limit_bytes=48 << 20,
        ),
        cost_estimate=pl.CostEstimate(
            flops=int(flops),
            transcendentals=int(transcendentals),
            bytes_accessed=int(param_bytes + io_bytes),
        ),
    )(x2d, ep, w1p, b1p, wenc, benc, w3p, b3p, w4p, b4p)

    return recon, mu, logvar


def reference_forward(x, eps, params):
    """Pure-JAX reference (same bf16 matmul inputs / bf16 eps / f32 accumulation)."""
    w1, b1, w21, b21, w22, b22, w3, b3, w4, b4 = params
    bf = jnp.bfloat16

    def dot(a, w):
        return jnp.dot(a.astype(bf), w.astype(bf), preferred_element_type=jnp.float32)

    x2d = x.reshape(-1, IN_DIM)
    h1 = jax.nn.relu(dot(x2d, w1) + b1)
    mu = dot(h1, w21) + b21
    logvar = dot(h1, w22) + b22
    eps_bf = eps.astype(bf).astype(jnp.float32)   # kernel consumes bf16 eps
    z = mu + eps_bf * jnp.exp(0.5 * logvar)
    h3 = jax.nn.relu(dot(z, w3) + b3)
    recon = jax.nn.sigmoid(dot(h3, w4) + b4)
    return recon, mu, logvar


if __name__ == "__main__":
    latent_dim = 32
    batch = 2

    key = jax.random.PRNGKey(0)
    k_x, k_eps, k_params = jax.random.split(key, 3)

    # PyTorch forward calls x.view(-1, 729); feed a (B, 27, 27) "image".
    x = jax.random.normal(k_x, (batch, 27, 27), dtype=jnp.float32)
    # eps ~ N(0, 1) as in torch.randn_like(std); sampled outside the kernel.
    eps = jax.random.normal(k_eps, (batch, latent_dim), dtype=jnp.float32)

    params = init_params(k_params, latent_dim)
    packed = pack_params(params, latent_dim)

    recon, mu, logvar = vae_forward(x, eps, packed, latent_dim)
    jax.block_until_ready((recon, mu, logvar))

    # sanity check against a pure-JAX reference (same bf16 precision choices)
    r_ref, mu_ref, lv_ref = reference_forward(x, eps, params)
    assert recon.shape == (batch, IN_DIM)
    assert mu.shape == (batch, latent_dim) and logvar.shape == (batch, latent_dim)
    assert jnp.allclose(recon.astype(jnp.float32), r_ref, atol=1e-2, rtol=1e-2)
    assert jnp.allclose(mu, mu_ref, atol=2e-3, rtol=2e-3)
    assert jnp.allclose(logvar, lv_ref, atol=2e-3, rtol=2e-3)

    print("KERNEL_OK")
</pallas_src>

<mosaic_0001>
module attributes {stable_mosaic.version = 11 : i64} {
  func.func @_vae_kernel(%arg0: i32, %arg1: memref<8x729xf32, #tpu.memory_space<vmem>>, %arg2: memref<8x128xbf16, #tpu.memory_space<vmem>>, %arg3: memref<768x256xbf16, #tpu.memory_space<vmem>>, %arg4: memref<1x256xf32, #tpu.memory_space<vmem>>, %arg5: memref<256x256xbf16, #tpu.memory_space<vmem>>, %arg6: memref<1x256xf32, #tpu.memory_space<vmem>>, %arg7: memref<128x256xbf16, #tpu.memory_space<vmem>>, %arg8: memref<1x256xf32, #tpu.memory_space<vmem>>, %arg9: memref<256x768xbf16, #tpu.memory_space<vmem>>, %arg10: memref<1x768xf32, #tpu.memory_space<vmem>>, %arg11: memref<8x729xbf16, #tpu.memory_space<vmem>>, %arg12: memref<8x32xf32, #tpu.memory_space<vmem>>, %arg13: memref<8x32xf32, #tpu.memory_space<vmem>>, %arg14: memref<8x768xbf16, #tpu.memory_space<vmem>>) attributes {dimension_semantics = [#tpu.dimension_semantics<parallel>], iteration_bounds = array<i64: 1>, scalar_prefetch = 0 : i64, scratch_operands = 1 : i64, tpu.core_type = #tpu.core_type<tc>, window_params = [{transform_indices = @transform_0, window_bounds = array<i64: 8, 729>}, {transform_indices = @transform_1, window_bounds = array<i64: 8, 128>}, {pipeline_mode = #tpu.pipeline_mode<synchronous>, transform_indices = @transform_2, window_bounds = array<i64: 768, 256>}, {pipeline_mode = #tpu.pipeline_mode<synchronous>, transform_indices = @transform_3, window_bounds = array<i64: 1, 256>}, {pipeline_mode = #tpu.pipeline_mode<synchronous>, transform_indices = @transform_4, window_bounds = array<i64: 256, 256>}, {pipeline_mode = #tpu.pipeline_mode<synchronous>, transform_indices = @transform_5, window_bounds = array<i64: 1, 256>}, {pipeline_mode = #tpu.pipeline_mode<synchronous>, transform_indices = @transform_6, window_bounds = array<i64: 128, 256>}, {pipeline_mode = #tpu.pipeline_mode<synchronous>, transform_indices = @transform_7, window_bounds = array<i64: 1, 256>}, {pipeline_mode = #tpu.pipeline_mode<synchronous>, transform_indices = @transform_8, window_bounds = array<i64: 256, 768>}, {pipeline_mode = #tpu.pipeline_mode<synchronous>, transform_indices = @transform_9, window_bounds = array<i64: 1, 768>}, {transform_indices = @transform_10, window_bounds = array<i64: 8, 729>}, {transform_indices = @transform_11, window_bounds = array<i64: 8, 32>}, {transform_indices = @transform_12, window_bounds = array<i64: 8, 32>}]} {
    %cst = arith.constant 0.000000e+00 : bf16
    %0 = vector.broadcast %cst : bf16 to vector<8x768xbf16>
    %c0 = arith.constant 0 : index
    %c0_0 = arith.constant 0 : index
    %1 = vector.load %arg14[%c0, %c0_0] : memref<8x768xbf16, #tpu.memory_space<vmem>>, vector<8x768xbf16>
    tpu.vector_store %arg14[%c0, %c0_0], %0 {strides = array<i32>} : memref<8x768xbf16, #tpu.memory_space<vmem>>, vector<8x768xbf16>,
    %c0_1 = arith.constant 0 : index
    %c0_2 = arith.constant 0 : index
    %2 = vector.load %arg1[%c0_1, %c0_2] : memref<8x729xf32, #tpu.memory_space<vmem>>, vector<8x729xf32>
    %3 = arith.truncf %2 : vector<8x729xf32> to vector<8x729xbf16>
    %c0_3 = arith.constant 0 : index
    %c0_4 = arith.constant 0 : index
    %4 = vector.load %arg14[%c0_3, %c0_4] : memref<8x768xbf16, #tpu.memory_space<vmem>>, vector<8x729xbf16>
    tpu.vector_store %arg14[%c0_3, %c0_4], %3 {strides = array<i32>} : memref<8x768xbf16, #tpu.memory_space<vmem>>, vector<8x729xbf16>,
    %c0_5 = arith.constant 0 : index
    %c0_6 = arith.constant 0 : index
    %5 = vector.load %arg14[%c0_5, %c0_6] : memref<8x768xbf16, #tpu.memory_space<vmem>>, vector<8x768xbf16>
    %c0_7 = arith.constant 0 : index
    %c0_8 = arith.constant 0 : index
    %6 = vector.load %arg3[%c0_7, %c0_8] : memref<768x256xbf16, #tpu.memory_space<vmem>>, vector<768x256xbf16>
    %cst_9 = arith.constant dense<0.000000e+00> : vector<8x256xf32>
    %7 = tpu.matmul %5, %6, %cst_9 {dimension_numbers = #tpu.dot_dimension_numbers<[1], [0], [0], [1], [0, 0, 1, 1], [], []>} : vector<8x768xbf16>, vector<768x256xbf16>, vector<8x256xf32> -> vector<8x256xf32>
    %c0_10 = arith.constant 0 : index
    %c0_11 = arith.constant 0 : index
    %8 = vector.load %arg4[%c0_10, %c0_11] : memref<1x256xf32, #tpu.memory_space<vmem>>, vector<1x256xf32>
    %9 = vector.broadcast %8 : vector<1x256xf32> to vector<8x256xf32>
    %10 = arith.addf %7, %9 : vector<8x256xf32>
    %cst_12 = arith.constant 0.000000e+00 : f32
    %11 = vector.broadcast %cst_12 : f32 to vector<8x256xf32>
    %12 = arith.maximumf %10, %11 : vector<8x256xf32>
    %13 = arith.truncf %12 : vector<8x256xf32> to vector<8x256xbf16>
    %c0_13 = arith.constant 0 : index
    %c0_14 = arith.constant 0 : index
    %14 = vector.load %arg5[%c0_13, %c0_14] : memref<256x256xbf16, #tpu.memory_space<vmem>>, vector<256x256xbf16>
    %cst_15 = arith.constant dense<0.000000e+00> : vector<8x256xf32>
    %15 = tpu.matmul %13, %14, %cst_15 {dimension_numbers = #tpu.dot_dimension_numbers<[1], [0], [0], [1], [0, 0, 1, 1], [], []>} : vector<8x256xbf16>, vector<256x256xbf16>, vector<8x256xf32> -> vector<8x256xf32>
    %c0_16 = arith.constant 0 : index
    %c0_17 = arith.constant 0 : index
    %16 = vector.load %arg6[%c0_16, %c0_17] : memref<1x256xf32, #tpu.memory_space<vmem>>, vector<1x256xf32>
    %17 = vector.broadcast %16 : vector<1x256xf32> to vector<8x256xf32>
    %18 = arith.addf %15, %17 : vector<8x256xf32>
    %19 = vector.extract_strided_slice %18 {offsets = [0, 0], sizes = [8, 128], strides = [1, 1]} : vector<8x256xf32> to vector<8x128xf32>
    %20 = vector.extract_strided_slice %18 {offsets = [0, 128], sizes = [8, 128], strides = [1, 1]} : vector<8x256xf32> to vector<8x128xf32>
    %cst_18 = arith.constant 5.000000e-01 : f32
    %21 = vector.broadcast %cst_18 : f32 to vector<8x128xf32>
    %22 = arith.mulf %21, %20 : vector<8x128xf32>
    %23 = math.exp %22 : vector<8x128xf32>
    %c0_19 = arith.constant 0 : index
    %c0_20 = arith.constant 0 : index
    %24 = vector.load %arg2[%c0_19, %c0_20] : memref<8x128xbf16, #tpu.memory_space<vmem>>, vector<8x128xbf16>
    %25 = arith.extf %24 : vector<8x128xbf16> to vector<8x128xf32>
    %26 = arith.mulf %25, %23 : vector<8x128xf32>
    %27 = arith.addf %19, %26 : vector<8x128xf32>
    %28 = arith.truncf %27 : vector<8x128xf32> to vector<8x128xbf16>
    %c0_21 = arith.constant 0 : index
    %c0_22 = arith.constant 0 : index
    %29 = vector.load %arg7[%c0_21, %c0_22] : memref<128x256xbf16, #tpu.memory_space<vmem>>, vector<128x256xbf16>
    %cst_23 = arith.constant dense<0.000000e+00> : vector<8x256xf32>
    %30 = tpu.matmul %28, %29, %cst_23 {dimension_numbers = #tpu.dot_dimension_numbers<[1], [0], [0], [1], [0, 0, 1, 1], [], []>} : vector<8x128xbf16>, vector<128x256xbf16>, vector<8x256xf32> -> vector<8x256xf32>
    %c0_24 = arith.constant 0 : index
    %c0_25 = arith.constant 0 : index
    %31 = vector.load %arg8[%c0_24, %c0_25] : memref<1x256xf32, #tpu.memory_space<vmem>>, vector<1x256xf32>
    %32 = vector.broadcast %31 : vector<1x256xf32> to vector<8x256xf32>
    %33 = arith.addf %30, %32 : vector<8x256xf32>
    %cst_26 = arith.constant 0.000000e+00 : f32
    %34 = vector.broadcast %cst_26 : f32 to vector<8x256xf32>
    %35 = arith.maximumf %33, %34 : vector<8x256xf32>
    %36 = arith.truncf %35 : vector<8x256xf32> to vector<8x256xbf16>
    %c0_27 = arith.constant 0 : index
    %c0_28 = arith.constant 0 : index
    %37 = vector.load %arg9[%c0_27, %c0_28] : memref<256x768xbf16, #tpu.memory_space<vmem>>, vector<256x768xbf16>
    %cst_29 = arith.constant dense<0.000000e+00> : vector<8x768xf32>
    %38 = tpu.matmul %36, %37, %cst_29 {dimension_numbers = #tpu.dot_dimension_numbers<[1], [0], [0], [1], [0, 0, 1, 1], [], []>} : vector<8x256xbf16>, vector<256x768xbf16>, vector<8x768xf32> -> vector<8x768xf32>
    %c0_30 = arith.constant 0 : index
    %c0_31 = arith.constant 0 : index
    %39 = vector.load %arg10[%c0_30, %c0_31] : memref<1x768xf32, #tpu.memory_space<vmem>>, vector<1x768xf32>
    %40 = vector.broadcast %39 : vector<1x768xf32> to vector<8x768xf32>
    %41 = arith.addf %38, %40 : vector<8x768xf32>
    %cst_32 = arith.constant 5.000000e-01 : f32
    %42 = vector.broadcast %cst_32 : f32 to vector<8x768xf32>
    %43 = arith.mulf %42, %41 : vector<8x768xf32>
    %44 = math.tanh %43 : vector<8x768xf32>
    %cst_33 = arith.constant 1.000000e+00 : f32
    %45 = vector.broadcast %cst_33 : f32 to vector<8x768xf32>
    %46 = arith.addf %44, %45 : vector<8x768xf32>
    %cst_34 = arith.constant 5.000000e-01 : f32
    %47 = vector.broadcast %cst_34 : f32 to vector<8x768xf32>
    %48 = arith.mulf %47, %46 : vector<8x768xf32>
    %49 = vector.extract_strided_slice %48 {offsets = [0, 0], sizes = [8, 729], strides = [1, 1]} : vector<8x768xf32> to vector<8x729xf32>
    %50 = arith.truncf %49 : vector<8x729xf32> to vector<8x729xbf16>
    %c0_35 = arith.constant 0 : index
    %c0_36 = arith.constant 0 : index
    %51 = vector.load %arg11[%c0_35, %c0_36] : memref<8x729xbf16, #tpu.memory_space<vmem>>, vector<8x729xbf16>
    tpu.vector_store %arg11[%c0_35, %c0_36], %50 {strides = array<i32>} : memref<8x729xbf16, #tpu.memory_space<vmem>>, vector<8x729xbf16>,
    %52 = vector.extract_strided_slice %19 {offsets = [0, 0], sizes = [8, 32], strides = [1, 1]} : vector<8x128xf32> to vector<8x32xf32>
    %c0_37 = arith.constant 0 : index
    %c0_38 = arith.constant 0 : index
    %53 = vector.load %arg12[%c0_37, %c0_38] : memref<8x32xf32, #tpu.memory_space<vmem>>, vector<8x32xf32>
    tpu.vector_store %arg12[%c0_37, %c0_38], %52 {strides = array<i32>} : memref<8x32xf32, #tpu.memory_space<vmem>>, vector<8x32xf32>,
    %54 = vector.extract_strided_slice %20 {offsets = [0, 0], sizes = [8, 32], strides = [1, 1]} : vector<8x128xf32> to vector<8x32xf32>
    %c0_39 = arith.constant 0 : index
    %c0_40 = arith.constant 0 : index
    %55 = vector.load %arg13[%c0_39, %c0_40] : memref<8x32xf32, #tpu.memory_space<vmem>>, vector<8x32xf32>
    tpu.vector_store %arg13[%c0_39, %c0_40], %54 {strides = array<i32>} : memref<8x32xf32, #tpu.memory_space<vmem>>, vector<8x32xf32>,
    return
  }
  func.func @transform_0(%arg0: i32) -> (i32, i32) {
    %c0_i32 = arith.constant 0 : i32
    %c0_i32_0 = arith.constant 0 : i32
    return %arg0, %c0_i32 : i32, i32
  }
  func.func @transform_1(%arg0: i32) -> (i32, i32) {
    %c0_i32 = arith.constant 0 : i32
    %c0_i32_0 = arith.constant 0 : i32
    return %arg0, %c0_i32 : i32, i32
  }
  func.func @transform_2(%arg0: i32) -> (i32, i32) {
    %c0_i32 = arith.constant 0 : i32
    %c0_i32_0 = arith.constant 0 : i32
    %c0_i32_1 = arith.constant 0 : i32
    return %c0_i32, %c0_i32_0 : i32, i32
  }
  func.func @transform_3(%arg0: i32) -> (i32, i32) {
    %c0_i32 = arith.constant 0 : i32
    %c0_i32_0 = arith.constant 0 : i32
    %c0_i32_1 = arith.constant 0 : i32
    return %c0_i32, %c0_i32_0 : i32, i32
  }
  func.func @transform_4(%arg0: i32) -> (i32, i32) {
    %c0_i32 = arith.constant 0 : i32
    %c0_i32_0 = arith.constant 0 : i32
    %c0_i32_1 = arith.constant 0 : i32
    return %c0_i32, %c0_i32_0 : i32, i32
  }
  func.func @transform_5(%arg0: i32) -> (i32, i32) {
    %c0_i32 = arith.constant 0 : i32
    %c0_i32_0 = arith.constant 0 : i32
    %c0_i32_1 = arith.constant 0 : i32
    return %c0_i32, %c0_i32_0 : i32, i32
  }
  func.func @transform_6(%arg0: i32) -> (i32, i32) {
    %c0_i32 = arith.constant 0 : i32
    %c0_i32_0 = arith.constant 0 : i32
    %c0_i32_1 = arith.constant 0 : i32
    return %c0_i32, %c0_i32_0 : i32, i32
  }
  func.func @transform_7(%arg0: i32) -> (i32, i32) {
    %c0_i32 = arith.constant 0 : i32
    %c0_i32_0 = arith.constant 0 : i32
    %c0_i32_1 = arith.constant 0 : i32
    return %c0_i32, %c0_i32_0 : i32, i32
  }
  func.func @transform_8(%arg0: i32) -> (i32, i32) {
    %c0_i32 = arith.constant 0 : i32
    %c0_i32_0 = arith.constant 0 : i32
    %c0_i32_1 = arith.constant 0 : i32
    return %c0_i32, %c0_i32_0 : i32, i32
  }
  func.func @transform_9(%arg0: i32) -> (i32, i32) {
    %c0_i32 = arith.constant 0 : i32
    %c0_i32_0 = arith.constant 0 : i32
    %c0_i32_1 = arith.constant 0 : i32
    return %c0_i32, %c0_i32_0 : i32, i32
  }
  func.func @transform_10(%arg0: i32) -> (i32, i32) {
    %c0_i32 = arith.constant 0 : i32
    %c0_i32_0 = arith.constant 0 : i32
    return %arg0, %c0_i32 : i32, i32
  }
  func.func @transform_11(%arg0: i32) -> (i32, i32) {
    %c0_i32 = arith.constant 0 : i32
    %c0_i32_0 = arith.constant 0 : i32
    return %arg0, %c0_i32 : i32, i32
  }
  func.func @transform_12(%arg0: i32) -> (i32, i32) {
    %c0_i32 = arith.constant 0 : i32
    %c0_i32_0 = arith.constant 0 : i32
    return %arg0, %c0_i32 : i32, i32
  }
}

</mosaic_0001>

<llo_original>
// kernel: vae_forward.1
$region0: #{vae_forward.1}
  #allocation0 [shape = 'u32[]', space=smem, size = 0x4, offset = 0x4, fixed_abs, tag = 'smem constant byte address 0x4 - core index']
  #allocation1 [shape = 'u32[72,128]{1,0:T(1,128)}', space=vmem, size = 0x9000, scoped, tag = 'internal scratch']
  #allocation2 [shape = 'bf16[8,768]{1,0:T(8,128)(2,1)}', space=vmem, size = 0x3000, scoped, tag = 'scratch operand']
  %s0 = inlined_call_operand.vmem [shape: f32[2,729], index: 0, kind: input, shape index: {}]
  %s1 = inlined_call_operand.vmem [shape: bf16[2,128], index: 1, kind: input, shape index: {}]
  %s2 = inlined_call_operand.hbm [shape: bf16[768,256], index: 2, kind: input, shape index: {}]
  %s3 = inlined_call_operand.vmem [shape: f32[1,256], index: 3, kind: input, shape index: {}]
  %s4 = inlined_call_operand.hbm [shape: bf16[256,256], index: 4, kind: input, shape index: {}]
  %s5 = inlined_call_operand.vmem [shape: f32[1,256], index: 5, kind: input, shape index: {}]
  %s6 = inlined_call_operand.vmem [shape: bf16[128,256], index: 6, kind: input, shape index: {}]
  %s7 = inlined_call_operand.vmem [shape: f32[1,256], index: 7, kind: input, shape index: {}]
  %s8 = inlined_call_operand.hbm [shape: bf16[256,768], index: 8, kind: input, shape index: {}]
  %s9 = inlined_call_operand.vmem [shape: f32[1,768], index: 9, kind: input, shape index: {}]
  %s10 = inlined_call_operand.hbm [shape: bf16[2,729], index: 10, kind: output, shape index: {0}]
  %s11 = inlined_call_operand.hbm [shape: f32[2,32], index: 11, kind: output, shape index: {1}]
  %s12 = inlined_call_operand.hbm [shape: f32[2,32], index: 12, kind: output, shape index: {2}]
  %13 = xla_tuple %s10, %s11, %s12
  %s14 = sld [smem:[#allocation0]]
  $region78: #{vae_forward.1} parent=0
    _
  %s16 = ssub.s32 1, %s14
  %s17 = scalar_select 0, %s16, %s14
  $region1: #{vae_forward.1} parent=0
    #allocation3 [shape = 'u8[393216]{0}', space=vmem, size = 0x60000, scoped, tag = 'input window, operand 2, single buffered']
    #allocation4 [shape = 's32[1]{0}', space=sflag, size = 0x4, scoped, tag = 'scoped memory for vae_forward.1']
    #allocation5 [shape = 's32[1]{0}', space=sflag, size = 0x4, scoped, tag = 'scoped memory for vae_forward.1']
    #allocation6 [shape = 'u8[131072]{0}', space=vmem, size = 0x20000, scoped, tag = 'input window, operand 4, single buffered']
    #allocation7 [shape = 's32[1]{0}', space=sflag, size = 0x4, scoped, tag = 'scoped memory for vae_forward.1']
    #allocation8 [shape = 'u8[393216]{0}', space=vmem, size = 0x60000, scoped, tag = 'input window, operand 8, single buffered']
    #allocation9 [shape = 'u8[12288]{0}', space=vmem, size = 0x3000, scoped, tag = 'output window, operand 0, single buffered']
    #allocation10 [shape = 'u8[4096]{0}', space=vmem, size = 0x1000, scoped, tag = 'output window, operand 1, single buffered']
    #allocation11 [shape = 's32[1]{0}', space=sflag, size = 0x4, scoped, tag = 'scoped memory for vae_forward.1']
    #allocation12 [shape = 'u8[4096]{0}', space=vmem, size = 0x1000, scoped, tag = 'output window, operand 2, single buffered']
    %18 = vsyncpa [#allocation4], 0
    %19 = vsyncpa [#allocation7], 0
    %20 = vsyncpa [#allocation5], 0
    %21 = vsyncpa [#allocation11], 0
    // Predicated region
    $region2: #{vae_forward.1} parent=1 // pred_check
      _
    $region3: #{vae_forward.1} parent=1 // pred_check_branch
      %23 = sbr.rel (0) target = $region5
    $region4: #{vae_forward.1} parent=1 // pred_region
      _
    $region5: #{vae_forward.1} parent=1 // pred_fallthru
      _
    // Predicated region
    $region6: #{vae_forward.1} parent=1 // pred_check
      _
    $region7: #{vae_forward.1} parent=1 // pred_check_branch
      %25 = sbr.rel (0) target = $region9
    $region8: #{vae_forward.1} parent=1 // pred_region
      _
    $region9: #{vae_forward.1} parent=1 // pred_fallthru
      _
    // Predicated region
    $region10: #{vae_forward.1} parent=1 // pred_check
      _
    $region11: #{vae_forward.1} parent=1 // pred_check_branch
      %27 = sbr.rel (0) target = $region13
    $region12: #{vae_forward.1} parent=1 // pred_region
      %29 = vsyncadd [#allocation4], 0
      %s30 = sshll.u32 %s2, 4
      %s31 = int_to_ptr.hbm [resolvable:$true] %s30
      %s32 = sshll.u32 [#allocation3], 4
      %s33 = int_to_ptr.vmem [resolvable:$true] %s32
      %38 = dma.hbm_to_vmem [thread:$0]  %s31, 12288, %s33, [#allocation4], 128, 128, 8
    $region13: #{vae_forward.1} parent=1 // pred_fallthru
      _
    // Predicated region
    $region14: #{vae_forward.1} parent=1 // pred_check
      _
    $region15: #{vae_forward.1} parent=1 // pred_check_branch
      %40 = sbr.rel (0) target = $region17
    $region16: #{vae_forward.1} parent=1 // pred_region
      _
    $region17: #{vae_forward.1} parent=1 // pred_fallthru
      _
    // Predicated region
    $region18: #{vae_forward.1} parent=1 // pred_check
      _
    $region19: #{vae_forward.1} parent=1 // pred_check_branch
      %42 = sbr.rel (0) target = $region21
    $region20: #{vae_forward.1} parent=1 // pred_region
      %44 = vsyncadd [#allocation7], 0
      %s45 = sshll.u32 %s4, 4
      %s46 = int_to_ptr.hbm [resolvable:$true] %s45
      %s47 = sshll.u32 [#allocation6], 4
      %s48 = int_to_ptr.vmem [resolvable:$true] %s47
      %53 = dma.hbm_to_vmem [thread:$0]  %s46, 4096, %s48, [#allocation7], 128, 128, 8
    $region21: #{vae_forward.1} parent=1 // pred_fallthru
      _
    // Predicated region
    $region22: #{vae_forward.1} parent=1 // pred_check
      _
    $region23: #{vae_forward.1} parent=1 // pred_check_branch
      %55 = sbr.rel (0) target = $region25
    $region24: #{vae_forward.1} parent=1 // pred_region
      _
    $region25: #{vae_forward.1} parent=1 // pred_fallthru
      _
    // Predicated region
    $region26: #{vae_forward.1} parent=1 // pred_check
      _
    $region27: #{vae_forward.1} parent=1 // pred_check_branch
      %57 = sbr.rel (0) target = $region29
    $region28: #{vae_forward.1} parent=1 // pred_region
      _
    $region29: #{vae_forward.1} parent=1 // pred_fallthru
      _
    // Predicated region
    $region30: #{vae_forward.1} parent=1 // pred_check
      _
    $region31: #{vae_forward.1} parent=1 // pred_check_branch
      %59 = sbr.rel (0) target = $region33
    $region32: #{vae_forward.1} parent=1 // pred_region
      _
    $region33: #{vae_forward.1} parent=1 // pred_fallthru
      _
    // Predicated region
    $region34: #{vae_forward.1} parent=1 // pred_check
      _
    $region35: #{vae_forward.1} parent=1 // pred_check_branch
      %61 = sbr.rel (0) target = $region37
    $region36: #{vae_forward.1} parent=1 // pred_region
      %63 = vsyncadd [#allocation7], 0
      %s64 = sshll.u32 %s8, 4
      %s65 = int_to_ptr.hbm [resolvable:$true] %s64
      %s66 = sshll.u32 [#allocation8], 4
      %s67 = int_to_ptr.vmem [resolvable:$true] %s66
      %72 = dma.hbm_to_vmem [thread:$0]  %s65, 12288, %s67, [#allocation7], 384, 384, 24
    $region37: #{vae_forward.1} parent=1 // pred_fallthru
      _
    // Predicated region
    $region38: #{vae_forward.1} parent=1 // pred_check
      _
    $region39: #{vae_forward.1} parent=1 // pred_check_branch
      %74 = sbr.rel (0) target = $region41
    $region40: #{vae_forward.1} parent=1 // pred_region
      _
    $region41: #{vae_forward.1} parent=1 // pred_fallthru
      _
    // Predicated region
    $region42: #{vae_forward.1} parent=1 // pred_check
      _
    $region43: #{vae_forward.1} parent=1 // pred_check_branch
      %76 = sbr.rel (0) target = $region45
    $region44: #{vae_forward.1} parent=1 // pred_region
      %78 = dma.done [#allocation4], 12288
    $region45: #{vae_forward.1} parent=1 // pred_fallthru
      _
    // Predicated region
    $region46: #{vae_forward.1} parent=1 // pred_check
      _
    $region47: #{vae_forward.1} parent=1 // pred_check_branch
      %80 = sbr.rel (0) target = $region49
    $region48: #{vae_forward.1} parent=1 // pred_region
      %82 = dma.done [#allocation7], 4096
    $region49: #{vae_forward.1} parent=1 // pred_fallthru
      _
    // Predicated region
    $region50: #{vae_forward.1} parent=1 // pred_check
      _
    $region51: #{vae_forward.1} parent=1 // pred_check_branch
      %84 = sbr.rel (0) target = $region53
    $region52: #{vae_forward.1} parent=1 // pred_region
      %86 = dma.done [#allocation7], 12288
    $region53: #{vae_forward.1} parent=1 // pred_fallthru
      _
    %88 = vst [vmem:[#allocation2] sm:$0xff] 0
    %89 = vst [vmem:[#allocation2 + $0x8] sm:$0xff] 0
    %90 = vst [vmem:[#allocation2 + $0x10] sm:$0xff] 0
    %v91 = vld [vmem:[%s0] sm:$0xff]
    %v92 = vld [vmem:[%s0 + $0x8] sm:$0xf]
    %v93 = vld [vmem:[%s0 + $0xc] sm:$0xff]
    %v94 = vld [vmem:[%s0 + $0x14] sm:$0xf]
    %v95 = vld [vmem:[%s0 + $0x18] sm:$0xff]
    %v96 = vld [vmem:[%s0 + $0x20] sm:$0xf]
    %v97 = vld [vmem:[%s0 + $0x24] sm:$0xff]
    %v98 = vld [vmem:[%s0 + $0x2c] sm:$0xf]
    %107 = vst [vmem:[#allocation1] ss:$4 sm:$0xff] %v91
    %s108 = scalar_lea.vmem [#allocation1], 1
    %109 = vst [vmem:[%s108] ss:$4 sm:$0xff] %v93
    %s110 = scalar_lea.vmem [#allocation1], 2
    %111 = vst [vmem:[%s110] ss:$4 sm:$0xff] %v95
    %s112 = scalar_lea.vmem [#allocation1], 3
    %113 = vst [vmem:[%s112] ss:$4 sm:$0xff] %v97
    %s114 = scalar_lea.vmem [#allocation1], 32
    %115 = vst [vmem:[%s114] ss:$4 sm:$0xff] %v92
    %s116 = scalar_lea.vmem [#allocation1], 33
    %117 = vst [vmem:[%s116] ss:$4 sm:$0xff] %v94
    %s118 = scalar_lea.vmem [#allocation1], 34
    %119 = vst [vmem:[%s118] ss:$4 sm:$0xff] %v96
    %s120 = scalar_lea.vmem [#allocation1], 35
    %121 = vst [vmem:[%s120] ss:$4 sm:$0xff] %v98
    %v122 = vld.sshfl [vmem:[#allocation1] sm:$0xff pattern:$0x73625140]
    %v123 = vld.sshfl [vmem:[#allocation1 + $0x8] sm:$0xff pattern:$0x73625140]
    %v124 = vld.sshfl [vmem:[#allocation1 + $0x10] sm:$0xff pattern:$0x73625140]
    %v125 = vld.sshfl [vmem:[#allocation1 + $0x18] sm:$0xff pattern:$0x73625140]
    %v126 = vld.sshfl [vmem:[#allocation1 + $0x20] sm:$0xff pattern:$0x73625140]
    %v127 = vld.sshfl [vmem:[#allocation1 + $0x28] sm:$0xff pattern:$0x73625140]
    %v134 = vpack.c.bf16 %v123, %v122
    %v135 = vpack.c.bf16 %v125, %v124
    %v136 = vpack.c.bf16 %v127, %v126
    %137 = vst [vmem:[#allocation2] sm:$0xff] %v134
    %138 = vst [vmem:[#allocation2 + $0x8] sm:$0xff] %v135
    %vm139 = vcmask 1043456
    %vm140 = vcmask 728068
    %vm141 = vmor %vm140, %vm139
    %142 = vst.msk [vmem:[#allocation2 + $0x10] sm:$0xff] %vm141, %v136
    %v143 = vld [vmem:[#allocation2] sm:$0xff]
    %v144 = vld [vmem:[#allocation2 + $0x8] sm:$0xff]
    %v145 = vld [vmem:[#allocation2 + $0x10] sm:$0xff]
    %v146 = vld [vmem:[#allocation3] sm:$0xff]
    %v147 = vld [vmem:[#allocation3 + $0x8] sm:$0xff]
    %v148 = vld [vmem:[#allocation3 + $0x10] sm:$0xff]
    %v149 = vld [vmem:[#allocation3 + $0x18] sm:$0xff]
    %v150 = vld [vmem:[#allocation3 + $0x20] sm:$0xff]
    %v151 = vld [vmem:[#allocation3 + $0x28] sm:$0xff]
    %v152 = vld [vmem:[#allocation3 + $0x30] sm:$0xff]
    %v153 = vld [vmem:[#allocation3 + $0x38] sm:$0xff]
    %v154 = vld [vmem:[#allocation3 + $0x40] sm:$0xff]
    %v155 = vld [vmem:[#allocation3 + $0x48] sm:$0xff]
    %v156 = vld [vmem:[#allocation3 + $0x50] sm:$0xff]
    %v157 = vld [vmem:[#allocation3 + $0x58] sm:$0xff]
    %v158 = vld [vmem:[#allocation3 + $0x60] sm:$0xff]
    %v159 = vld [vmem:[#allocation3 + $0x68] sm:$0xff]
    %v160 = vld [vmem:[#allocation3 + $0x70] sm:$0xff]
    %v161 = vld [vmem:[#allocation3 + $0x78] sm:$0xff]
    %v162 = vld [vmem:[#allocation3 + $0x80] sm:$0xff]
    %v163 = vld [vmem:[#allocation3 + $0x88] sm:$0xff]
    %v164 = vld [vmem:[#allocation3 + $0x90] sm:$0xff]
    %v165 = vld [vmem:[#allocation3 + $0x98] sm:$0xff]
    %v166 = vld [vmem:[#allocation3 + $0xa0] sm:$0xff]
    %v167 = vld [vmem:[#allocation3 + $0xa8] sm:$0xff]
    %v168 = vld [vmem:[#allocation3 + $0xb0] sm:$0xff]
    %v169 = vld [vmem:[#allocation3 + $0xb8] sm:$0xff]
    %v170 = vld [vmem:[#allocation3 + $0xc0] sm:$0xff]
    %v171 = vld [vmem:[#allocation3 + $0xc8] sm:$0xff]
    %v172 = vld [vmem:[#allocation3 + $0xd0] sm:$0xff]
    %v173 = vld [vmem:[#allocation3 + $0xd8] sm:$0xff]
    %v174 = vld [vmem:[#allocation3 + $0xe0] sm:$0xff]
    %v175 = vld [vmem:[#allocation3 + $0xe8] sm:$0xff]
    %v176 = vld [vmem:[#allocation3 + $0xf0] sm:$0xff]
    %v177 = vld [vmem:[#allocation3 + $0xf8] sm:$0xff]
    %v178 = vld [vmem:[#allocation3 + $0x100] sm:$0xff]
    %v179 = vld [vmem:[#allocation3 + $0x108] sm:$0xff]
    %v180 = vld [vmem:[#allocation3 + $0x110] sm:$0xff]
    %v181 = vld [vmem:[#allocation3 + $0x118] sm:$0xff]
    %v182 = vld [vmem:[#allocation3 + $0x120] sm:$0xff]
    %v183 = vld [vmem:[#allocation3 + $0x128] sm:$0xff]
    %v184 = vld [vmem:[#allocation3 + $0x130] sm:$0xff]
    %v185 = vld [vmem:[#allocation3 + $0x138] sm:$0xff]
    %v186 = vld [vmem:[#allocation3 + $0x140] sm:$0xff]
    %v187 = vld [vmem:[#allocation3 + $0x148] sm:$0xff]
    %v188 = vld [vmem:[#allocation3 + $0x150] sm:$0xff]
    %v189 = vld [vmem:[#allocation3 + $0x158] sm:$0xff]
    %v190 = vld [vmem:[#allocation3 + $0x160] sm:$0xff]
    %v191 = vld [vmem:[#allocation3 + $0x168] sm:$0xff]
    %v192 = vld [vmem:[#allocation3 + $0x170] sm:$0xff]
    %v193 = vld [vmem:[#allocation3 + $0x178] sm:$0xff]
    %v194 = vld [vmem:[#allocation3 + $0x180] sm:$0xff]
    %v195 = vld [vmem:[#allocation3 + $0x188] sm:$0xff]
    %v196 = vld [vmem:[#allocation3 + $0x190] sm:$0xff]
    %v197 = vld [vmem:[#allocation3 + $0x198] sm:$0xff]
    %v198 = vld [vmem:[#allocation3 + $0x1a0] sm:$0xff]
    %v199 = vld [vmem:[#allocation3 + $0x1a8] sm:$0xff]
    %v200 = vld [vmem:[#allocation3 + $0x1b0] sm:$0xff]
    %v201 = vld [vmem:[#allocation3 + $0x1b8] sm:$0xff]
    %v202 = vld [vmem:[#allocation3 + $0x1c0] sm:$0xff]
    %v203 = vld [vmem:[#allocation3 + $0x1c8] sm:$0xff]
    %v204 = vld [vmem:[#allocation3 + $0x1d0] sm:$0xff]
    %v205 = vld [vmem:[#allocation3 + $0x1d8] sm:$0xff]
    %v206 = vld [vmem:[#allocation3 + $0x1e0] sm:$0xff]
    %v207 = vld [vmem:[#allocation3 + $0x1e8] sm:$0xff]
    %v208 = vld [vmem:[#allocation3 + $0x1f0] sm:$0xff]
    %v209 = vld [vmem:[#allocation3 + $0x1f8] sm:$0xff]
    %v210 = vld [vmem:[#allocation3 + $0x200] sm:$0xff]
    %v211 = vld [vmem:[#allocation3 + $0x208] sm:$0xff]
    %v212 = vld [vmem:[#allocation3 + $0x210] sm:$0xff]
    %v213 = vld [vmem:[#allocation3 + $0x218] sm:$0xff]
    %v214 = vld [vmem:[#allocation3 + $0x220] sm:$0xff]
    %v215 = vld [vmem:[#allocation3 + $0x228] sm:$0xff]
    %v216 = vld [vmem:[#allocation3 + $0x230] sm:$0xff]
    %v217 = vld [vmem:[#allocation3 + $0x238] sm:$0xff]
    %v218 = vld [vmem:[#allocation3 + $0x240] sm:$0xff]
    %v219 = vld [vmem:[#allocation3 + $0x248] sm:$0xff]
    %v220 = vld [vmem:[#allocation3 + $0x250] sm:$0xff]
    %v221 = vld [vmem:[#allocation3 + $0x258] sm:$0xff]
    %v222 = vld [vmem:[#allocation3 + $0x260] sm:$0xff]
    %v223 = vld [vmem:[#allocation3 + $0x268] sm:$0xff]
    %v224 = vld [vmem:[#allocation3 + $0x270] sm:$0xff]
    %v225 = vld [vmem:[#allocation3 + $0x278] sm:$0xff]
    %v226 = vld [vmem:[#allocation3 + $0x280] sm:$0xff]
    %v227 = vld [vmem:[#allocation3 + $0x288] sm:$0xff]
    %v228 = vld [vmem:[#allocation3 + $0x290] sm:$0xff]
    %v229 = vld [vmem:[#allocation3 + $0x298] sm:$0xff]
    %v230 = vld [vmem:[#allocation3 + $0x2a0] sm:$0xff]
    %v231 = vld [vmem:[#allocation3 + $0x2a8] sm:$0xff]
    %v232 = vld [vmem:[#allocation3 + $0x2b0] sm:$0xff]
    %v233 = vld [vmem:[#allocation3 + $0x2b8] sm:$0xff]
    %v234 = vld [vmem:[#allocation3 + $0x2c0] sm:$0xff]
    %v235 = vld [vmem:[#allocation3 + $0x2c8] sm:$0xff]
    %v236 = vld [vmem:[#allocation3 + $0x2d0] sm:$0xff]
    %v237 = vld [vmem:[#allocation3 + $0x2d8] sm:$0xff]
    %v238 = vld [vmem:[#allocation3 + $0x2e0] sm:$0xff]
    %v239 = vld [vmem:[#allocation3 + $0x2e8] sm:$0xff]
    %v240 = vld [vmem:[#allocation3 + $0x2f0] sm:$0xff]
    %v241 = vld [vmem:[#allocation3 + $0x2f8] sm:$0xff]
    %v242 = vld [vmem:[%s3] sm:$0x3]
    %v244 = vperm.slane %v242, 0
    %v245 = vperm.slane %v242, 1
    %v251 = vunpack.c.l.b16 %v143
    %v252 = vunpack.c.h.b16 %v143
    %v253 = vunpack.c.l.b16 %v144
    %v254 = vunpack.c.h.b16 %v144
    %v255 = vunpack.c.l.b16 %v145
    %v256 = vunpack.c.h.b16 %v145
    %v257 = vpack.c.b16 %v251, %v251
    %v258 = vpack.c.b16 %v252, %v252
    %v259 = vpack.c.b16 %v253, %v253
    %v260 = vpack.c.b16 %v254, %v254
    %v261 = vpack.c.b16 %v255, %v255
    %v262 = vpack.c.b16 %v256, %v256
    %v365 = vunpack.c.l.b16 %v146
    %v366 = vunpack.c.h.b16 %v146
    %v367 = vunpack.c.l.b16 %v147
    %v368 = vunpack.c.h.b16 %v147
    %v369 = vunpack.c.l.b16 %v148
    %v370 = vunpack.c.h.b16 %v148
    %v371 = vunpack.c.l.b16 %v149
    %v372 = vunpack.c.h.b16 %v149
    %v373 = vunpack.c.l.b16 %v150
    %v374 = vunpack.c.h.b16 %v150
    %v375 = vunpack.c.l.b16 %v151
    %v376 = vunpack.c.h.b16 %v151
    %v377 = vunpack.c.l.b16 %v152
    %v378 = vunpack.c.h.b16 %v152
    %v379 = vunpack.c.l.b16 %v153
    %v380 = vunpack.c.h.b16 %v153
    %v381 = vunpack.c.l.b16 %v154
    %v382 = vunpack.c.h.b16 %v154
    %v383 = vunpack.c.l.b16 %v155
    %v384 = vunpack.c.h.b16 %v155
    %v385 = vunpack.c.l.b16 %v156
    %v386 = vunpack.c.h.b16 %v156
    %v387 = vunpack.c.l.b16 %v157
    %v388 = vunpack.c.h.b16 %v157
    %v389 = vunpack.c.l.b16 %v158
    %v390 = vunpack.c.h.b16 %v158
    %v391 = vunpack.c.l.b16 %v159
    %v392 = vunpack.c.h.b16 %v159
    %v393 = vunpack.c.l.b16 %v160
    %v394 = vunpack.c.h.b16 %v160
    %v395 = vunpack.c.l.b16 %v161
    %v396 = vunpack.c.h.b16 %v161
    %v397 = vunpack.c.l.b16 %v162
    %v398 = vunpack.c.h.b16 %v162
    %v399 = vunpack.c.l.b16 %v163
    %v400 = vunpack.c.h.b16 %v163
    %v401 = vunpack.c.l.b16 %v164
    %v402 = vunpack.c.h.b16 %v164
    %v403 = vunpack.c.l.b16 %v165
    %v404 = vunpack.c.h.b16 %v165
    %v405 = vunpack.c.l.b16 %v166
    %v406 = vunpack.c.h.b16 %v166
    %v407 = vunpack.c.l.b16 %v167
    %v408 = vunpack.c.h.b16 %v167
    %v409 = vunpack.c.l.b16 %v168
    %v410 = vunpack.c.h.b16 %v168
    %v411 = vunpack.c.l.b16 %v169
    %v412 = vunpack.c.h.b16 %v169
    %v413 = vunpack.c.l.b16 %v170
    %v414 = vunpack.c.h.b16 %v170
    %v415 = vunpack.c.l.b16 %v171
    %v416 = vunpack.c.h.b16 %v171
    %v417 = vunpack.c.l.b16 %v172
    %v418 = vunpack.c.h.b16 %v172
    %v419 = vunpack.c.l.b16 %v173
    %v420 = vunpack.c.h.b16 %v173
    %v421 = vunpack.c.l.b16 %v174
    %v422 = vunpack.c.h.b16 %v174
    %v423 = vunpack.c.l.b16 %v175
    %v424 = vunpack.c.h.b16 %v175
    %v425 = vunpack.c.l.b16 %v176
    %v426 = vunpack.c.h.b16 %v176
    %v427 = vunpack.c.l.b16 %v177
    %v428 = vunpack.c.h.b16 %v177
    %v429 = vunpack.c.l.b16 %v178
    %v430 = vunpack.c.h.b16 %v178
    %v431 = vunpack.c.l.b16 %v179
    %v432 = vunpack.c.h.b16 %v179
    %v433 = vunpack.c.l.b16 %v180
    %v434 = vunpack.c.h.b16 %v180
    %v435 = vunpack.c.l.b16 %v181
    %v436 = vunpack.c.h.b16 %v181
    %v437 = vunpack.c.l.b16 %v182
    %v438 = vunpack.c.h.b16 %v182
    %v439 = vunpack.c.l.b16 %v183
    %v440 = vunpack.c.h.b16 %v183
    %v441 = vunpack.c.l.b16 %v184
    %v442 = vunpack.c.h.b16 %v184
    %v443 = vunpack.c.l.b16 %v185
    %v444 = vunpack.c.h.b16 %v185
    %v445 = vunpack.c.l.b16 %v186
    %v446 = vunpack.c.h.b16 %v186
    %v447 = vunpack.c.l.b16 %v187
    %v448 = vunpack.c.h.b16 %v187
    %v449 = vunpack.c.l.b16 %v188
    %v450 = vunpack.c.h.b16 %v188
    %v451 = vunpack.c.l.b16 %v189
    %v452 = vunpack.c.h.b16 %v189
    %v453 = vunpack.c.l.b16 %v190
    %v454 = vunpack.c.h.b16 %v190
    %v455 = vunpack.c.l.b16 %v191
    %v456 = vunpack.c.h.b16 %v191
    %v457 = vunpack.c.l.b16 %v192
    %v458 = vunpack.c.h.b16 %v192
    %v459 = vunpack.c.l.b16 %v193
    %v460 = vunpack.c.h.b16 %v193
    %v461 = vunpack.c.l.b16 %v194
    %v462 = vunpack.c.h.b16 %v194
    %v463 = vunpack.c.l.b16 %v195
    %v464 = vunpack.c.h.b16 %v195
    %v465 = vunpack.c.l.b16 %v196
    %v466 = vunpack.c.h.b16 %v196
    %v467 = vunpack.c.l.b16 %v197
    %v468 = vunpack.c.h.b16 %v197
    %v469 = vunpack.c.l.b16 %v198
    %v470 = vunpack.c.h.b16 %v198
    %v471 = vunpack.c.l.b16 %v199
    %v472 = vunpack.c.h.b16 %v199
    %v473 = vunpack.c.l.b16 %v200
    %v474 = vunpack.c.h.b16 %v200
    %v475 = vunpack.c.l.b16 %v201
    %v476 = vunpack.c.h.b16 %v201
    %v477 = vunpack.c.l.b16 %v202
    %v478 = vunpack.c.h.b16 %v202
    %v479 = vunpack.c.l.b16 %v203
    %v480 = vunpack.c.h.b16 %v203
    %v481 = vunpack.c.l.b16 %v204
    %v482 = vunpack.c.h.b16 %v204
    %v483 = vunpack.c.l.b16 %v205
    %v484 = vunpack.c.h.b16 %v205
    %v485 = vunpack.c.l.b16 %v206
    %v486 = vunpack.c.h.b16 %v206
    %v487 = vunpack.c.l.b16 %v207
    %v488 = vunpack.c.h.b16 %v207
    %v489 = vunpack.c.l.b16 %v208
    %v490 = vunpack.c.h.b16 %v208
    %v491 = vunpack.c.l.b16 %v209
    %v492 = vunpack.c.h.b16 %v209
    %v493 = vunpack.c.l.b16 %v210
    %v494 = vunpack.c.h.b16 %v210
    %v495 = vunpack.c.l.b16 %v211
    %v496 = vunpack.c.h.b16 %v211
    %v497 = vunpack.c.l.b16 %v212
    %v498 = vunpack.c.h.b16 %v212
    %v499 = vunpack.c.l.b16 %v213
    %v500 = vunpack.c.h.b16 %v213
    %v501 = vunpack.c.l.b16 %v214
    %v502 = vunpack.c.h.b16 %v214
    %v503 = vunpack.c.l.b16 %v215
    %v504 = vunpack.c.h.b16 %v215
    %v505 = vunpack.c.l.b16 %v216
    %v506 = vunpack.c.h.b16 %v216
    %v507 = vunpack.c.l.b16 %v217
    %v508 = vunpack.c.h.b16 %v217
    %v509 = vunpack.c.l.b16 %v218
    %v510 = vunpack.c.h.b16 %v218
    %v511 = vunpack.c.l.b16 %v219
    %v512 = vunpack.c.h.b16 %v219
    %v513 = vunpack.c.l.b16 %v220
    %v514 = vunpack.c.h.b16 %v220
    %v515 = vunpack.c.l.b16 %v221
    %v516 = vunpack.c.h.b16 %v221
    %v517 = vunpack.c.l.b16 %v222
    %v518 = vunpack.c.h.b16 %v222
    %v519 = vunpack.c.l.b16 %v223
    %v520 = vunpack.c.h.b16 %v223
    %v521 = vunpack.c.l.b16 %v224
    %v522 = vunpack.c.h.b16 %v224
    %v523 = vunpack.c.l.b16 %v225
    %v524 = vunpack.c.h.b16 %v225
    %v525 = vunpack.c.l.b16 %v226
    %v526 = vunpack.c.h.b16 %v226
    %v527 = vunpack.c.l.b16 %v227
    %v528 = vunpack.c.h.b16 %v227
    %v529 = vunpack.c.l.b16 %v228
    %v530 = vunpack.c.h.b16 %v228
    %v531 = vunpack.c.l.b16 %v229
    %v532 = vunpack.c.h.b16 %v229
    %v533 = vunpack.c.l.b16 %v230
    %v534 = vunpack.c.h.b16 %v230
    %v535 = vunpack.c.l.b16 %v231
    %v536 = vunpack.c.h.b16 %v231
    %v537 = vunpack.c.l.b16 %v232
    %v538 = vunpack.c.h.b16 %v232
    %v539 = vunpack.c.l.b16 %v233
    %v540 = vunpack.c.h.b16 %v233
    %v541 = vunpack.c.l.b16 %v234
    %v542 = vunpack.c.h.b16 %v234
    %v543 = vunpack.c.l.b16 %v235
    %v544 = vunpack.c.h.b16 %v235
    %v545 = vunpack.c.l.b16 %v236
    %v546 = vunpack.c.h.b16 %v236
    %v547 = vunpack.c.l.b16 %v237
    %v548 = vunpack.c.h.b16 %v237
    %v549 = vunpack.c.l.b16 %v238
    %v550 = vunpack.c.h.b16 %v238
    %v551 = vunpack.c.l.b16 %v239
    %v552 = vunpack.c.h.b16 %v239
    %v553 = vunpack.c.l.b16 %v240
    %v554 = vunpack.c.h.b16 %v240
    %v555 = vunpack.c.l.b16 %v241
    %v556 = vunpack.c.h.b16 %v241
    %v557 = vpack.c.b16 %v367, %v365
    %v558 = vpack.c.b16 %v368, %v366
    %v559 = vpack.c.b16 %v371, %v369
    %v560 = vpack.c.b16 %v372, %v370
    %v561 = vpack.c.b16 %v375, %v373
    %v562 = vpack.c.b16 %v376, %v374
    %v563 = vpack.c.b16 %v379, %v377
    %v564 = vpack.c.b16 %v380, %v378
    %v565 = vpack.c.b16 %v383, %v381
    %v566 = vpack.c.b16 %v384, %v382
    %v567 = vpack.c.b16 %v387, %v385
    %v568 = vpack.c.b16 %v388, %v386
    %v569 = vpack.c.b16 %v391, %v389
    %v570 = vpack.c.b16 %v392, %v390
    %v571 = vpack.c.b16 %v395, %v393
    %v572 = vpack.c.b16 %v396, %v394
    %v573 = vpack.c.b16 %v399, %v397
    %v574 = vpack.c.b16 %v400, %v398
    %v575 = vpack.c.b16 %v403, %v401
    %v576 = vpack.c.b16 %v404, %v402
    %v577 = vpack.c.b16 %v407, %v405
    %v578 = vpack.c.b16 %v408, %v406
    %v579 = vpack.c.b16 %v411, %v409
    %v580 = vpack.c.b16 %v412, %v410
    %v581 = vpack.c.b16 %v415, %v413
    %v582 = vpack.c.b16 %v416, %v414
    %v583 = vpack.c.b16 %v419, %v417
    %v584 = vpack.c.b16 %v420, %v418
    %v585 = vpack.c.b16 %v423, %v421
    %v586 = vpack.c.b16 %v424, %v422
    %v587 = vpack.c.b16 %v427, %v425
    %v588 = vpack.c.b16 %v428, %v426
    %v589 = vpack.c.b16 %v431, %v429
    %v590 = vpack.c.b16 %v432, %v430
    %v591 = vpack.c.b16 %v435, %v433
    %v592 = vpack.c.b16 %v436, %v434
    %v593 = vpack.c.b16 %v439, %v437
    %v594 = vpack.c.b16 %v440, %v438
    %v595 = vpack.c.b16 %v443, %v441
    %v596 = vpack.c.b16 %v444, %v442
    %v597 = vpack.c.b16 %v447, %v445
    %v598 = vpack.c.b16 %v448, %v446
    %v599 = vpack.c.b16 %v451, %v449
    %v600 = vpack.c.b16 %v452, %v450
    %v601 = vpack.c.b16 %v455, %v453
    %v602 = vpack.c.b16 %v456, %v454
    %v603 = vpack.c.b16 %v459, %v457
    %v604 = vpack.c.b16 %v460, %v458
    %v605 = vpack.c.b16 %v463, %v461
    %v606 = vpack.c.b16 %v464, %v462
    %v607 = vpack.c.b16 %v467, %v465
    %v608 = vpack.c.b16 %v468, %v466
    %v609 = vpack.c.b16 %v471, %v469
    %v610 = vpack.c.b16 %v472, %v470
    %v611 = vpack.c.b16 %v475, %v473
    %v612 = vpack.c.b16 %v476, %v474
    %v613 = vpack.c.b16 %v479, %v477
    %v614 = vpack.c.b16 %v480, %v478
    %v615 = vpack.c.b16 %v483, %v481
    %v616 = vpack.c.b16 %v484, %v482
    %v617 = vpack.c.b16 %v487, %v485
    %v618 = vpack.c.b16 %v488, %v486
    %v619 = vpack.c.b16 %v491, %v489
    %v620 = vpack.c.b16 %v492, %v490
    %v621 = vpack.c.b16 %v495, %v493
    %v622 = vpack.c.b16 %v496, %v494
    %v623 = vpack.c.b16 %v499, %v497
    %v624 = vpack.c.b16 %v500, %v498
    %v625 = vpack.c.b16 %v503, %v501
    %v626 = vpack.c.b16 %v504, %v502
    %v627 = vpack.c.b16 %v507, %v505
    %v628 = vpack.c.b16 %v508, %v506
    %v629 = vpack.c.b16 %v511, %v509
    %v630 = vpack.c.b16 %v512, %v510
    %v631 = vpack.c.b16 %v515, %v513
    %v632 = vpack.c.b16 %v516, %v514
    %v633 = vpack.c.b16 %v519, %v517
    %v634 = vpack.c.b16 %v520, %v518
    %v635 = vpack.c.b16 %v523, %v521
    %v636 = vpack.c.b16 %v524, %v522
    %v637 = vpack.c.b16 %v527, %v525
    %v638 = vpack.c.b16 %v528, %v526
    %v639 = vpack.c.b16 %v531, %v529
    %v640 = vpack.c.b16 %v532, %v530
    %v641 = vpack.c.b16 %v535, %v533
    %v642 = vpack.c.b16 %v536, %v534
    %v643 = vpack.c.b16 %v539, %v537
    %v644 = vpack.c.b16 %v540, %v538
    %v645 = vpack.c.b16 %v543, %v541
    %v646 = vpack.c.b16 %v544, %v542
    %v647 = vpack.c.b16 %v547, %v545
    %v648 = vpack.c.b16 %v548, %v546
    %v649 = vpack.c.b16 %v551, %v549
    %v650 = vpack.c.b16 %v552, %v550
    %v651 = vpack.c.b16 %v555, %v553
    %v652 = vpack.c.b16 %v556, %v554
    %749 = vmatpush.bf16.msra.mxu0 %v571
    %750 = vmatpush.bf16.msra.mxu0 %v569
    %751 = vmatpush.bf16.msra.mxu0 %v567
    %752 = vmatpush.bf16.msra.mxu0 %v565
    %753 = vmatpush.bf16.msra.mxu0 %v563
    %754 = vmatpush.bf16.msra.mxu0 %v561
    %755 = vmatpush.bf16.msra.mxu0 %v559
    %756 = vmatpush.bf16.msra.mxu0 %v557
    %757 = vmatmul.bf16.gmra.mxu0 %v257
    %v758 = vpop.f32.mrf.mxu0
    %v759 = vadd.f32 %v244, %v758
    %v760 = vpop.f32.mrf.mxu0
    %761 = vdwg.mxu0
    %762 = vmatpush.bf16.msra.mxu0 %v587
    %763 = vmatpush.bf16.msra.mxu0 %v585
    %764 = vmatpush.bf16.msra.mxu0 %v583
    %765 = vmatpush.bf16.msra.mxu0 %v581
    %766 = vmatpush.bf16.msra.mxu0 %v579
    %767 = vmatpush.bf16.msra.mxu0 %v577
    %768 = vmatpush.bf16.msra.mxu0 %v575
    %769 = vmatpush.bf16.msra.mxu0 %v573
    %770 = vmatmul.bf16.gmra.mxu0 %v258
    %v771 = vpop.f32.mrf.mxu0
    %v772 = vadd.f32 %v759, %v771
    %v773 = vpop.f32.mrf.mxu0
    %774 = vdwg.mxu0
    %775 = vmatpush.bf16.msra.mxu0 %v603
    %776 = vmatpush.bf16.msra.mxu0 %v601
    %777 = vmatpush.bf16.msra.mxu0 %v599
    %778 = vmatpush.bf16.msra.mxu0 %v597
    %779 = vmatpush.bf16.msra.mxu0 %v595
    %780 = vmatpush.bf16.msra.mxu0 %v593
    %781 = vmatpush.bf16.msra.mxu0 %v591
    %782 = vmatpush.bf16.msra.mxu0 %v589
    %783 = vmatmul.bf16.gmra.mxu0 %v259
    %v784 = vpop.f32.mrf.mxu0
    %v785 = vadd.f32 %v772, %v784
    %v786 = vpop.f32.mrf.mxu0
    %787 = vdwg.mxu0
    %788 = vmatpush.bf16.msra.mxu0 %v619
    %789 = vmatpush.bf16.msra.mxu0 %v617
    %790 = vmatpush.bf16.msra.mxu0 %v615
    %791 = vmatpush.bf16.msra.mxu0 %v613
    %792 = vmatpush.bf16.msra.mxu0 %v611
    %793 = vmatpush.bf16.msra.mxu0 %v609
    %794 = vmatpush.bf16.msra.mxu0 %v607
    %795 = vmatpush.bf16.msra.mxu0 %v605
    %796 = vmatmul.bf16.gmra.mxu0 %v260
    %v797 = vpop.f32.mrf.mxu0
    %v798 = vadd.f32 %v785, %v797
    %v799 = vpop.f32.mrf.mxu0
    %800 = vdwg.mxu0
    %801 = vmatpush.bf16.msra.mxu0 %v635
    %802 = vmatpush.bf16.msra.mxu0 %v633
    %803 = vmatpush.bf16.msra.mxu0 %v631
    %804 = vmatpush.bf16.msra.mxu0 %v629
    %805 = vmatpush.bf16.msra.mxu0 %v627
    %806 = vmatpush.bf16.msra.mxu0 %v625
    %807 = vmatpush.bf16.msra.mxu0 %v623
    %808 = vmatpush.bf16.msra.mxu0 %v621
    %809 = vmatmul.bf16.gmra.mxu0 %v261
    %v810 = vpop.f32.mrf.mxu0
    %v811 = vadd.f32 %v798, %v810
    %v812 = vpop.f32.mrf.mxu0
    %813 = vdwg.mxu0
    %814 = vmatpush.bf16.msra.mxu0 %v651
    %815 = vmatpush.bf16.msra.mxu0 %v649
    %816 = vmatpush.bf16.msra.mxu0 %v647
    %817 = vmatpush.bf16.msra.mxu0 %v645
    %818 = vmatpush.bf16.msra.mxu0 %v643
    %819 = vmatpush.bf16.msra.mxu0 %v641
    %820 = vmatpush.bf16.msra.mxu0 %v639
    %821 = vmatpush.bf16.msra.mxu0 %v637
    %822 = vmatmul.bf16.gmra.mxu0 %v262
    %v823 = vpop.f32.mrf.mxu0
    %v824 = vadd.f32 %v811, %v823
    %v825 = vpop.f32.mrf.mxu0
    %826 = vdwg.mxu0
    %827 = vmatpush.bf16.msra.mxu0 %v572
    %828 = vmatpush.bf16.msra.mxu0 %v570
    %829 = vmatpush.bf16.msra.mxu0 %v568
    %830 = vmatpush.bf16.msra.mxu0 %v566
    %831 = vmatpush.bf16.msra.mxu0 %v564
    %832 = vmatpush.bf16.msra.mxu0 %v562
    %833 = vmatpush.bf16.msra.mxu0 %v560
    %834 = vmatpush.bf16.msra.mxu0 %v558
    %835 = vmatmul.bf16.gmra.mxu0 %v257
    %v836 = vpop.f32.mrf.mxu0
    %v837 = vadd.f32 %v245, %v836
    %v838 = vpop.f32.mrf.mxu0
    %839 = vdwg.mxu0
    %840 = vmatpush.bf16.msra.mxu0 %v588
    %841 = vmatpush.bf16.msra.mxu0 %v586
    %842 = vmatpush.bf16.msra.mxu0 %v584
    %843 = vmatpush.bf16.msra.mxu0 %v582
    %844 = vmatpush.bf16.msra.mxu0 %v580
    %845 = vmatpush.bf16.msra.mxu0 %v578
    %846 = vmatpush.bf16.msra.mxu0 %v576
    %847 = vmatpush.bf16.msra.mxu0 %v574
    %848 = vmatmul.bf16.gmra.mxu0 %v258
    %v849 = vpop.f32.mrf.mxu0
    %v850 = vadd.f32 %v837, %v849
    %v851 = vpop.f32.mrf.mxu0
    %852 = vdwg.mxu0
    %853 = vmatpush.bf16.msra.mxu0 %v604
    %854 = vmatpush.bf16.msra.mxu0 %v602
    %855 = vmatpush.bf16.msra.mxu0 %v600
    %856 = vmatpush.bf16.msra.mxu0 %v598
    %857 = vmatpush.bf16.msra.mxu0 %v596
    %858 = vmatpush.bf16.msra.mxu0 %v594
    %859 = vmatpush.bf16.msra.mxu0 %v592
    %860 = vmatpush.bf16.msra.mxu0 %v590
    %861 = vmatmul.bf16.gmra.mxu0 %v259
    %v862 = vpop.f32.mrf.mxu0
    %v863 = vadd.f32 %v850, %v862
    %v864 = vpop.f32.mrf.mxu0
    %865 = vdwg.mxu0
    %866 = vmatpush.bf16.msra.mxu0 %v620
    %867 = vmatpush.bf16.msra.mxu0 %v618
    %868 = vmatpush.bf16.msra.mxu0 %v616
    %869 = vmatpush.bf16.msra.mxu0 %v614
    %870 = vmatpush.bf16.msra.mxu0 %v612
    %871 = vmatpush.bf16.msra.mxu0 %v610
    %872 = vmatpush.bf16.msra.mxu0 %v608
    %873 = vmatpush.bf16.msra.mxu0 %v606
    %874 = vmatmul.bf16.gmra.mxu0 %v260
    %v875 = vpop.f32.mrf.mxu0
    %v876 = vadd.f32 %v863, %v875
    %v877 = vpop.f32.mrf.mxu0
    %878 = vdwg.mxu0
    %879 = vmatpush.bf16.msra.mxu0 %v636
    %880 = vmatpush.bf16.msra.mxu0 %v634
    %881 = vmatpush.bf16.msra.mxu0 %v632
    %882 = vmatpush.bf16.msra.mxu0 %v630
    %883 = vmatpush.bf16.msra.mxu0 %v628
    %884 = vmatpush.bf16.msra.mxu0 %v626
    %885 = vmatpush.bf16.msra.mxu0 %v624
    %886 = vmatpush.bf16.msra.mxu0 %v622
    %887 = vmatmul.bf16.gmra.mxu0 %v261
    %v888 = vpop.f32.mrf.mxu0
    %v889 = vadd.f32 %v876, %v888
    %v890 = vpop.f32.mrf.mxu0
    %891 = vdwg.mxu0
    %892 = vmatpush.bf16.msra.mxu0 %v652
    %893 = vmatpush.bf16.msra.mxu0 %v650
    %894 = vmatpush.bf16.msra.mxu0 %v648
    %895 = vmatpush.bf16.msra.mxu0 %v646
    %896 = vmatpush.bf16.msra.mxu0 %v644
    %897 = vmatpush.bf16.msra.mxu0 %v642
    %898 = vmatpush.bf16.msra.mxu0 %v640
    %899 = vmatpush.bf16.msra.mxu0 %v638
    %900 = vmatmul.bf16.gmra.mxu0 %v262
    %v901 = vpop.f32.mrf.mxu0
    %v902 = vadd.f32 %v889, %v901
    %v903 = vpop.f32.mrf.mxu0
    %904 = vdwg.mxu0
    %v905 = vmax.f32 %v824, 0.0
    %v906 = vmax.f32 %v902, 0.0
    %v907 = vpack.c.bf16 %v905, %v905
    %v908 = vpack.c.bf16 %v906, %v906
    %v909 = vld [vmem:[#allocation6] sm:$0xff]
    %v910 = vld [vmem:[#allocation6 + $0x8] sm:$0xff]
    %v911 = vld [vmem:[#allocation6 + $0x10] sm:$0xff]
    %v912 = vld [vmem:[#allocation6 + $0x18] sm:$0xff]
    %v913 = vld [vmem:[#allocation6 + $0x20] sm:$0xff]
    %v914 = vld [vmem:[#allocation6 + $0x28] sm:$0xff]
    %v915 = vld [vmem:[#allocation6 + $0x30] sm:$0xff]
    %v916 = vld [vmem:[#allocation6 + $0x38] sm:$0xff]
    %v917 = vld [vmem:[#allocation6 + $0x40] sm:$0xff]
    %v918 = vld [vmem:[#allocation6 + $0x48] sm:$0xff]
    %v919 = vld [vmem:[#allocation6 + $0x50] sm:$0xff]
    %v920 = vld [vmem:[#allocation6 + $0x58] sm:$0xff]
    %v921 = vld [vmem:[#allocation6 + $0x60] sm:$0xff]
    %v922 = vld [vmem:[#allocation6 + $0x68] sm:$0xff]
    %v923 = vld [vmem:[#allocation6 + $0x70] sm:$0xff]
    %v924 = vld [vmem:[#allocation6 + $0x78] sm:$0xff]
    %v925 = vld [vmem:[#allocation6 + $0x80] sm:$0xff]
    %v926 = vld [vmem:[#allocation6 + $0x88] sm:$0xff]
    %v927 = vld [vmem:[#allocation6 + $0x90] sm:$0xff]
    %v928 = vld [vmem:[#allocation6 + $0x98] sm:$0xff]
    %v929 = vld [vmem:[#allocation6 + $0xa0] sm:$0xff]
    %v930 = vld [vmem:[#allocation6 + $0xa8] sm:$0xff]
    %v931 = vld [vmem:[#allocation6 + $0xb0] sm:$0xff]
    %v932 = vld [vmem:[#allocation6 + $0xb8] sm:$0xff]
    %v933 = vld [vmem:[#allocation6 + $0xc0] sm:$0xff]
    %v934 = vld [vmem:[#allocation6 + $0xc8] sm:$0xff]
    %v935 = vld [vmem:[#allocation6 + $0xd0] sm:$0xff]
    %v936 = vld [vmem:[#allocation6 + $0xd8] sm:$0xff]
    %v937 = vld [vmem:[#allocation6 + $0xe0] sm:$0xff]
    %v938 = vld [vmem:[#allocation6 + $0xe8] sm:$0xff]
    %v939 = vld [vmem:[#allocation6 + $0xf0] sm:$0xff]
    %v940 = vld [vmem:[#allocation6 + $0xf8] sm:$0xff]
    %v941 = vld [vmem:[%s5] sm:$0x3]
    %v943 = vperm.slane %v941, 0
    %v944 = vperm.slane %v941, 1
    %v979 = vunpack.c.l.b16 %v909
    %v980 = vunpack.c.h.b16 %v909
    %v981 = vunpack.c.l.b16 %v910
    %v982 = vunpack.c.h.b16 %v910
    %v983 = vunpack.c.l.b16 %v911
    %v984 = vunpack.c.h.b16 %v911
    %v985 = vunpack.c.l.b16 %v912
    %v986 = vunpack.c.h.b16 %v912
    %v987 = vunpack.c.l.b16 %v913
    %v988 = vunpack.c.h.b16 %v913
    %v989 = vunpack.c.l.b16 %v914
    %v990 = vunpack.c.h.b16 %v914
    %v991 = vunpack.c.l.b16 %v915
    %v992 = vunpack.c.h.b16 %v915
    %v993 = vunpack.c.l.b16 %v916
    %v994 = vunpack.c.h.b16 %v916
    %v995 = vunpack.c.l.b16 %v917
    %v996 = vunpack.c.h.b16 %v917
    %v997 = vunpack.c.l.b16 %v918
    %v998 = vunpack.c.h.b16 %v918
    %v999 = vunpack.c.l.b16 %v919
    %v1000 = vunpack.c.h.b16 %v919
    %v1001 = vunpack.c.l.b16 %v920
    %v1002 = vunpack.c.h.b16 %v920
    %v1003 = vunpack.c.l.b16 %v921
    %v1004 = vunpack.c.h.b16 %v921
    %v1005 = vunpack.c.l.b16 %v922
    %v1006 = vunpack.c.h.b16 %v922
    %v1007 = vunpack.c.l.b16 %v923
    %v1008 = vunpack.c.h.b16 %v923
    %v1009 = vunpack.c.l.b16 %v924
    %v1010 = vunpack.c.h.b16 %v924
    %v1011 = vunpack.c.l.b16 %v925
    %v1012 = vunpack.c.h.b16 %v925
    %v1013 = vunpack.c.l.b16 %v926
    %v1014 = vunpack.c.h.b16 %v926
    %v1015 = vunpack.c.l.b16 %v927
    %v1016 = vunpack.c.h.b16 %v927
    %v1017 = vunpack.c.l.b16 %v928
    %v1018 = vunpack.c.h.b16 %v928
    %v1019 = vunpack.c.l.b16 %v929
    %v1020 = vunpack.c.h.b16 %v929
    %v1021 = vunpack.c.l.b16 %v930
    %v1022 = vunpack.c.h.b16 %v930
    %v1023 = vunpack.c.l.b16 %v931
    %v1024 = vunpack.c.h.b16 %v931
    %v1025 = vunpack.c.l.b16 %v932
    %v1026 = vunpack.c.h.b16 %v932
    %v1027 = vunpack.c.l.b16 %v933
    %v1028 = vunpack.c.h.b16 %v933
    %v1029 = vunpack.c.l.b16 %v934
    %v1030 = vunpack.c.h.b16 %v934
    %v1031 = vunpack.c.l.b16 %v935
    %v1032 = vunpack.c.h.b16 %v935
    %v1033 = vunpack.c.l.b16 %v936
    %v1034 = vunpack.c.h.b16 %v936
    %v1035 = vunpack.c.l.b16 %v937
    %v1036 = vunpack.c.h.b16 %v937
    %v1037 = vunpack.c.l.b16 %v938
    %v1038 = vunpack.c.h.b16 %v938
    %v1039 = vunpack.c.l.b16 %v939
    %v1040 = vunpack.c.h.b16 %v939
    %v1041 = vunpack.c.l.b16 %v940
    %v1042 = vunpack.c.h.b16 %v940
    %v1043 = vpack.c.b16 %v981, %v979
    %v1044 = vpack.c.b16 %v982, %v980
    %v1045 = vpack.c.b16 %v985, %v983
    %v1046 = vpack.c.b16 %v986, %v984
    %v1047 = vpack.c.b16 %v989, %v987
    %v1048 = vpack.c.b16 %v990, %v988
    %v1049 = vpack.c.b16 %v993, %v991
    %v1050 = vpack.c.b16 %v994, %v992
    %v1051 = vpack.c.b16 %v997, %v995
    %v1052 = vpack.c.b16 %v998, %v996
    %v1053 = vpack.c.b16 %v1001, %v999
    %v1054 = vpack.c.b16 %v1002, %v1000
    %v1055 = vpack.c.b16 %v1005, %v1003
    %v1056 = vpack.c.b16 %v1006, %v1004
    %v1057 = vpack.c.b16 %v1009, %v1007
    %v1058 = vpack.c.b16 %v1010, %v1008
    %v1059 = vpack.c.b16 %v1013, %v1011
    %v1060 = vpack.c.b16 %v1014, %v1012
    %v1061 = vpack.c.b16 %v1017, %v1015
    %v1062 = vpack.c.b16 %v1018, %v1016
    %v1063 = vpack.c.b16 %v1021, %v1019
    %v1064 = vpack.c.b16 %v1022, %v1020
    %v1065 = vpack.c.b16 %v1025, %v1023
    %v1066 = vpack.c.b16 %v1026, %v1024
    %v1067 = vpack.c.b16 %v1029, %v1027
    %v1068 = vpack.c.b16 %v1030, %v1028
    %v1069 = vpack.c.b16 %v1033, %v1031
    %v1070 = vpack.c.b16 %v1034, %v1032
    %v1071 = vpack.c.b16 %v1037, %v1035
    %v1072 = vpack.c.b16 %v1038, %v1036
    %v1073 = vpack.c.b16 %v1041, %v1039
    %v1074 = vpack.c.b16 %v1042, %v1040
    %1107 = vmatpush.bf16.msra.mxu0 %v1057
    %1108 = vmatpush.bf16.msra.mxu0 %v1055
    %1109 = vmatpush.bf16.msra.mxu0 %v1053
    %1110 = vmatpush.bf16.msra.mxu0 %v1051
    %1111 = vmatpush.bf16.msra.mxu0 %v1049
    %1112 = vmatpush.bf16.msra.mxu0 %v1047
    %1113 = vmatpush.bf16.msra.mxu0 %v1045
    %1114 = vmatpush.bf16.msra.mxu0 %v1043
    %1115 = vmatmul.bf16.gmra.mxu0 %v907
    %v1116 = vpop.f32.mrf.mxu0
    %v1117 = vadd.f32 %v943, %v1116
    %v1118 = vpop.f32.mrf.mxu0
    %1119 = vdwg.mxu0
    %1120 = vmatpush.bf16.msra.mxu0 %v1073
    %1121 = vmatpush.bf16.msra.mxu0 %v1071
    %1122 = vmatpush.bf16.msra.mxu0 %v1069
    %1123 = vmatpush.bf16.msra.mxu0 %v1067
    %1124 = vmatpush.bf16.msra.mxu0 %v1065
    %1125 = vmatpush.bf16.msra.mxu0 %v1063
    %1126 = vmatpush.bf16.msra.mxu0 %v1061
    %1127 = vmatpush.bf16.msra.mxu0 %v1059
    %1128 = vmatmul.bf16.gmra.mxu0 %v908
    %v1129 = vpop.f32.mrf.mxu0
    %v1130 = vadd.f32 %v1117, %v1129
    %v1131 = vpop.f32.mrf.mxu0
    %1132 = vdwg.mxu0
    %1133 = vmatpush.bf16.msra.mxu0 %v1058
    %1134 = vmatpush.bf16.msra.mxu0 %v1056
    %1135 = vmatpush.bf16.msra.mxu0 %v1054
    %1136 = vmatpush.bf16.msra.mxu0 %v1052
    %1137 = vmatpush.bf16.msra.mxu0 %v1050
    %1138 = vmatpush.bf16.msra.mxu0 %v1048
    %1139 = vmatpush.bf16.msra.mxu0 %v1046
    %1140 = vmatpush.bf16.msra.mxu0 %v1044
    %1141 = vmatmul.bf16.gmra.mxu0 %v907
    %v1142 = vpop.f32.mrf.mxu0
    %v1143 = vadd.f32 %v944, %v1142
    %v1144 = vpop.f32.mrf.mxu0
    %1145 = vdwg.mxu0
    %1146 = vmatpush.bf16.msra.mxu0 %v1074
    %1147 = vmatpush.bf16.msra.mxu0 %v1072
    %1148 = vmatpush.bf16.msra.mxu0 %v1070
    %1149 = vmatpush.bf16.msra.mxu0 %v1068
    %1150 = vmatpush.bf16.msra.mxu0 %v1066
    %1151 = vmatpush.bf16.msra.mxu0 %v1064
    %1152 = vmatpush.bf16.msra.mxu0 %v1062
    %1153 = vmatpush.bf16.msra.mxu0 %v1060
    %1154 = vmatmul.bf16.gmra.mxu0 %v908
    %v1155 = vpop.f32.mrf.mxu0
    %v1156 = vadd.f32 %v1143, %v1155
    %v1157 = vpop.f32.mrf.mxu0
    %1158 = vdwg.mxu0
    %v1159 = vmul.f32 %v1156, 0.5
    %v1160 = vmul.f32 %v1159, 1.442695
    %v1161 = vpow.pop %v1160
    %v1162 = vld [vmem:[%s1] sm:$0x1]
    %v1163 = vld [vmem:[%s1 + $0x1] sm:$0x1]
    %v1164 = vld [vmem:[%s1 + $0x2] sm:$0x1]
    %v1165 = vld [vmem:[%s1 + $0x3] sm:$0x1]
    %v1166 = vunpack.c.l.bf16 %v1162
    %v1167 = vunpack.c.l.bf16 %v1163
    %v1168 = vunpack.c.l.bf16 %v1164
    %v1169 = vunpack.c.l.bf16 %v1165
    %v1171 = vrot.slane %v1161, 2
    %v1172 = vrot.slane %v1161, 4
    %v1173 = vrot.slane %v1161, 6
    %v1177 = vmul.f32 %v1166, %v1161
    %v1178 = vmul.f32 %v1167, %v1171
    %v1179 = vmul.f32 %v1168, %v1172
    %v1180 = vmul.f32 %v1169, %v1173
    %1185 = vst [vmem:[#allocation1] ss:$4 sm:$0xff] %v1177
    %s1186 = scalar_lea.vmem [#allocation1], 1
    %1187 = vst [vmem:[%s1186] ss:$4 sm:$0xff] %v1178
    %s1188 = scalar_lea.vmem [#allocation1], 2
    %1189 = vst [vmem:[%s1188] ss:$4 sm:$0xff] %v1179
    %s1190 = scalar_lea.vmem [#allocation1], 3
    %1191 = vst [vmem:[%s1190] ss:$4 sm:$0xff] %v1180
    %v1192 = vld.sshfl [vmem:[#allocation1] sm:$0xff pattern:$0x73625140]
    %v1194 = vadd.f32 %v1130, %v1192
    %v1195 = vpack.c.bf16 %v1194, %v1194
    %v1196 = vld [vmem:[%s6] sm:$0xff]
    %v1197 = vld [vmem:[%s6 + $0x8] sm:$0xff]
    %v1198 = vld [vmem:[%s6 + $0x10] sm:$0xff]
    %v1199 = vld [vmem:[%s6 + $0x18] sm:$0xff]
    %v1200 = vld [vmem:[%s6 + $0x20] sm:$0xff]
    %v1201 = vld [vmem:[%s6 + $0x28] sm:$0xff]
    %v1202 = vld [vmem:[%s6 + $0x30] sm:$0xff]
    %v1203 = vld [vmem:[%s6 + $0x38] sm:$0xff]
    %v1204 = vld [vmem:[%s6 + $0x40] sm:$0xff]
    %v1205 = vld [vmem:[%s6 + $0x48] sm:$0xff]
    %v1206 = vld [vmem:[%s6 + $0x50] sm:$0xff]
    %v1207 = vld [vmem:[%s6 + $0x58] sm:$0xff]
    %v1208 = vld [vmem:[%s6 + $0x60] sm:$0xff]
    %v1209 = vld [vmem:[%s6 + $0x68] sm:$0xff]
    %v1210 = vld [vmem:[%s6 + $0x70] sm:$0xff]
    %v1211 = vld [vmem:[%s6 + $0x78] sm:$0xff]
    %v1212 = vld [vmem:[%s7] sm:$0x3]
    %v1214 = vperm.slane %v1212, 0
    %v1215 = vperm.slane %v1212, 1
    %v1234 = vunpack.c.l.b16 %v1196
    %v1235 = vunpack.c.h.b16 %v1196
    %v1236 = vunpack.c.l.b16 %v1197
    %v1237 = vunpack.c.h.b16 %v1197
    %v1238 = vunpack.c.l.b16 %v1198
    %v1239 = vunpack.c.h.b16 %v1198
    %v1240 = vunpack.c.l.b16 %v1199
    %v1241 = vunpack.c.h.b16 %v1199
    %v1242 = vunpack.c.l.b16 %v1200
    %v1243 = vunpack.c.h.b16 %v1200
    %v1244 = vunpack.c.l.b16 %v1201
    %v1245 = vunpack.c.h.b16 %v1201
    %v1246 = vunpack.c.l.b16 %v1202
    %v1247 = vunpack.c.h.b16 %v1202
    %v1248 = vunpack.c.l.b16 %v1203
    %v1249 = vunpack.c.h.b16 %v1203
    %v1250 = vunpack.c.l.b16 %v1204
    %v1251 = vunpack.c.h.b16 %v1204
    %v1252 = vunpack.c.l.b16 %v1205
    %v1253 = vunpack.c.h.b16 %v1205
    %v1254 = vunpack.c.l.b16 %v1206
    %v1255 = vunpack.c.h.b16 %v1206
    %v1256 = vunpack.c.l.b16 %v1207
    %v1257 = vunpack.c.h.b16 %v1207
    %v1258 = vunpack.c.l.b16 %v1208
    %v1259 = vunpack.c.h.b16 %v1208
    %v1260 = vunpack.c.l.b16 %v1209
    %v1261 = vunpack.c.h.b16 %v1209
    %v1262 = vunpack.c.l.b16 %v1210
    %v1263 = vunpack.c.h.b16 %v1210
    %v1264 = vunpack.c.l.b16 %v1211
    %v1265 = vunpack.c.h.b16 %v1211
    %v1266 = vpack.c.b16 %v1236, %v1234
    %v1267 = vpack.c.b16 %v1237, %v1235
    %v1268 = vpack.c.b16 %v1240, %v1238
    %v1269 = vpack.c.b16 %v1241, %v1239
    %v1270 = vpack.c.b16 %v1244, %v1242
    %v1271 = vpack.c.b16 %v1245, %v1243
    %v1272 = vpack.c.b16 %v1248, %v1246
    %v1273 = vpack.c.b16 %v1249, %v1247
    %v1274 = vpack.c.b16 %v1252, %v1250
    %v1275 = vpack.c.b16 %v1253, %v1251
    %v1276 = vpack.c.b16 %v1256, %v1254
    %v1277 = vpack.c.b16 %v1257, %v1255
    %v1278 = vpack.c.b16 %v1260, %v1258
    %v1279 = vpack.c.b16 %v1261, %v1259
    %v1280 = vpack.c.b16 %v1264, %v1262
    %v1281 = vpack.c.b16 %v1265, %v1263
    %1298 = vmatpush.bf16.msra.mxu0 %v1280
    %1299 = vmatpush.bf16.msra.mxu0 %v1278
    %1300 = vmatpush.bf16.msra.mxu0 %v1276
    %1301 = vmatpush.bf16.msra.mxu0 %v1274
    %1302 = vmatpush.bf16.msra.mxu0 %v1272
    %1303 = vmatpush.bf16.msra.mxu0 %v1270
    %1304 = vmatpush.bf16.msra.mxu0 %v1268
    %1305 = vmatpush.bf16.msra.mxu0 %v1266
    %1306 = vmatmul.bf16.gmra.mxu0 %v1195
    %v1307 = vpop.f32.mrf.mxu0
    %v1308 = vadd.f32 %v1214, %v1307
    %v1309 = vpop.f32.mrf.mxu0
    %1310 = vdwg.mxu0
    %1311 = vmatpush.bf16.msra.mxu0 %v1281
    %1312 = vmatpush.bf16.msra.mxu0 %v1279
    %1313 = vmatpush.bf16.msra.mxu0 %v1277
    %1314 = vmatpush.bf16.msra.mxu0 %v1275
    %1315 = vmatpush.bf16.msra.mxu0 %v1273
    %1316 = vmatpush.bf16.msra.mxu0 %v1271
    %1317 = vmatpush.bf16.msra.mxu0 %v1269
    %1318 = vmatpush.bf16.msra.mxu0 %v1267
    %1319 = vmatmul.bf16.gmra.mxu0 %v1195
    %v1320 = vpop.f32.mrf.mxu0
    %v1321 = vadd.f32 %v1215, %v1320
    %v1322 = vpop.f32.mrf.mxu0
    %1323 = vdwg.mxu0
    %v1324 = vmax.f32 %v1308, 0.0
    %v1325 = vmax.f32 %v1321, 0.0
    %v1326 = vpack.c.bf16 %v1324, %v1324
    %v1327 = vpack.c.bf16 %v1325, %v1325
    %v1328 = vld [vmem:[#allocation8] sm:$0xff]
    %v1329 = vld [vmem:[#allocation8 + $0x8] sm:$0xff]
    %v1330 = vld [vmem:[#allocation8 + $0x10] sm:$0xff]
    %v1331 = vld [vmem:[#allocation8 + $0x18] sm:$0xff]
    %v1332 = vld [vmem:[#allocation8 + $0x20] sm:$0xff]
    %v1333 = vld [vmem:[#allocation8 + $0x28] sm:$0xff]
    %v1334 = vld [vmem:[#allocation8 + $0x30] sm:$0xff]
    %v1335 = vld [vmem:[#allocation8 + $0x38] sm:$0xff]
    %v1336 = vld [vmem:[#allocation8 + $0x40] sm:$0xff]
    %v1337 = vld [vmem:[#allocation8 + $0x48] sm:$0xff]
    %v1338 = vld [vmem:[#allocation8 + $0x50] sm:$0xff]
    %v1339 = vld [vmem:[#allocation8 + $0x58] sm:$0xff]
    %v1340 = vld [vmem:[#allocation8 + $0x60] sm:$0xff]
    %v1341 = vld [vmem:[#allocation8 + $0x68] sm:$0xff]
    %v1342 = vld [vmem:[#allocation8 + $0x70] sm:$0xff]
    %v1343 = vld [vmem:[#allocation8 + $0x78] sm:$0xff]
    %v1344 = vld [vmem:[#allocation8 + $0x80] sm:$0xff]
    %v1345 = vld [vmem:[#allocation8 + $0x88] sm:$0xff]
    %v1346 = vld [vmem:[#allocation8 + $0x90] sm:$0xff]
    %v1347 = vld [vmem:[#allocation8 + $0x98] sm:$0xff]
    %v1348 = vld [vmem:[#allocation8 + $0xa0] sm:$0xff]
    %v1349 = vld [vmem:[#allocation8 + $0xa8] sm:$0xff]
    %v1350 = vld [vmem:[#allocation8 + $0xb0] sm:$0xff]
    %v1351 = vld [vmem:[#allocation8 + $0xb8] sm:$0xff]
    %v1352 = vld [vmem:[#allocation8 + $0xc0] sm:$0xff]
    %v1353 = vld [vmem:[#allocation8 + $0xc8] sm:$0xff]
    %v1354 = vld [vmem:[#allocation8 + $0xd0] sm:$0xff]
    %v1355 = vld [vmem:[#allocation8 + $0xd8] sm:$0xff]
    %v1356 = vld [vmem:[#allocation8 + $0xe0] sm:$0xff]
    %v1357 = vld [vmem:[#allocation8 + $0xe8] sm:$0xff]
    %v1358 = vld [vmem:[#allocation8 + $0xf0] sm:$0xff]
    %v1359 = vld [vmem:[#allocation8 + $0xf8] sm:$0xff]
    %v1360 = vld [vmem:[#allocation8 + $0x100] sm:$0xff]
    %v1361 = vld [vmem:[#allocation8 + $0x108] sm:$0xff]
    %v1362 = vld [vmem:[#allocation8 + $0x110] sm:$0xff]
    %v1363 = vld [vmem:[#allocation8 + $0x118] sm:$0xff]
    %v1364 = vld [vmem:[#allocation8 + $0x120] sm:$0xff]
    %v1365 = vld [vmem:[#allocation8 + $0x128] sm:$0xff]
    %v1366 = vld [vmem:[#allocation8 + $0x130] sm:$0xff]
    %v1367 = vld [vmem:[#allocation8 + $0x138] sm:$0xff]
    %v1368 = vld [vmem:[#allocation8 + $0x140] sm:$0xff]
    %v1369 = vld [vmem:[#allocation8 + $0x148] sm:$0xff]
    %v1370 = vld [vmem:[#allocation8 + $0x150] sm:$0xff]
    %v1371 = vld [vmem:[#allocation8 + $0x158] sm:$0xff]
    %v1372 = vld [vmem:[#allocation8 + $0x160] sm:$0xff]
    %v1373 = vld [vmem:[#allocation8 + $0x168] sm:$0xff]
    %v1374 = vld [vmem:[#allocation8 + $0x170] sm:$0xff]
    %v1375 = vld [vmem:[#allocation8 + $0x178] sm:$0xff]
    %v1376 = vld [vmem:[#allocation8 + $0x180] sm:$0xff]
    %v1377 = vld [vmem:[#allocation8 + $0x188] sm:$0xff]
    %v1378 = vld [vmem:[#allocation8 + $0x190] sm:$0xff]
    %v1379 = vld [vmem:[#allocation8 + $0x198] sm:$0xff]
    %v1380 = vld [vmem:[#allocation8 + $0x1a0] sm:$0xff]
    %v1381 = vld [vmem:[#allocation8 + $0x1a8] sm:$0xff]
    %v1382 = vld [vmem:[#allocation8 + $0x1b0] sm:$0xff]
    %v1383 = vld [vmem:[#allocation8 + $0x1b8] sm:$0xff]
    %v1384 = vld [vmem:[#allocation8 + $0x1c0] sm:$0xff]
    %v1385 = vld [vmem:[#allocation8 + $0x1c8] sm:$0xff]
    %v1386 = vld [vmem:[#allocation8 + $0x1d0] sm:$0xff]
    %v1387 = vld [vmem:[#allocation8 + $0x1d8] sm:$0xff]
    %v1388 = vld [vmem:[#allocation8 + $0x1e0] sm:$0xff]
    %v1389 = vld [vmem:[#allocation8 + $0x1e8] sm:$0xff]
    %v1390 = vld [vmem:[#allocation8 + $0x1f0] sm:$0xff]
    %v1391 = vld [vmem:[#allocation8 + $0x1f8] sm:$0xff]
    %v1392 = vld [vmem:[#allocation8 + $0x200] sm:$0xff]
    %v1393 = vld [vmem:[#allocation8 + $0x208] sm:$0xff]
    %v1394 = vld [vmem:[#allocation8 + $0x210] sm:$0xff]
    %v1395 = vld [vmem:[#allocation8 + $0x218] sm:$0xff]
    %v1396 = vld [vmem:[#allocation8 + $0x220] sm:$0xff]
    %v1397 = vld [vmem:[#allocation8 + $0x228] sm:$0xff]
    %v1398 = vld [vmem:[#allocation8 + $0x230] sm:$0xff]
    %v1399 = vld [vmem:[#allocation8 + $0x238] sm:$0xff]
    %v1400 = vld [vmem:[#allocation8 + $0x240] sm:$0xff]
    %v1401 = vld [vmem:[#allocation8 + $0x248] sm:$0xff]
    %v1402 = vld [vmem:[#allocation8 + $0x250] sm:$0xff]
    %v1403 = vld [vmem:[#allocation8 + $0x258] sm:$0xff]
    %v1404 = vld [vmem:[#allocation8 + $0x260] sm:$0xff]
    %v1405 = vld [vmem:[#allocation8 + $0x268] sm:$0xff]
    %v1406 = vld [vmem:[#allocation8 + $0x270] sm:$0xff]
    %v1407 = vld [vmem:[#allocation8 + $0x278] sm:$0xff]
    %v1408 = vld [vmem:[#allocation8 + $0x280] sm:$0xff]
    %v1409 = vld [vmem:[#allocation8 + $0x288] sm:$0xff]
    %v1410 = vld [vmem:[#allocation8 + $0x290] sm:$0xff]
    %v1411 = vld [vmem:[#allocation8 + $0x298] sm:$0xff]
    %v1412 = vld [vmem:[#allocation8 + $0x2a0] sm:$0xff]
    %v1413 = vld [vmem:[#allocation8 + $0x2a8] sm:$0xff]
    %v1414 = vld [vmem:[#allocation8 + $0x2b0] sm:$0xff]
    %v1415 = vld [vmem:[#allocation8 + $0x2b8] sm:$0xff]
    %v1416 = vld [vmem:[#allocation8 + $0x2c0] sm:$0xff]
    %v1417 = vld [vmem:[#allocation8 + $0x2c8] sm:$0xff]
    %v1418 = vld [vmem:[#allocation8 + $0x2d0] sm:$0xff]
    %v1419 = vld [vmem:[#allocation8 + $0x2d8] sm:$0xff]
    %v1420 = vld [vmem:[#allocation8 + $0x2e0] sm:$0xff]
    %v1421 = vld [vmem:[#allocation8 + $0x2e8] sm:$0xff]
    %v1422 = vld [vmem:[#allocation8 + $0x2f0] sm:$0xff]
    %v1423 = vld [vmem:[#allocation8 + $0x2f8] sm:$0xff]
    %v1424 = vld [vmem:[%s9] sm:$0x3f]
    %v1426 = vperm.slane %v1424, 0
    %v1427 = vperm.slane %v1424, 1
    %v1428 = vperm.slane %v1424, 2
    %v1429 = vperm.slane %v1424, 3
    %v1430 = vperm.slane %v1424, 4
    %v1431 = vperm.slane %v1424, 5
    %v1534 = vunpack.c.l.b16 %v1328
    %v1535 = vunpack.c.h.b16 %v1328
    %v1536 = vunpack.c.l.b16 %v1329
    %v1537 = vunpack.c.h.b16 %v1329
    %v1538 = vunpack.c.l.b16 %v1330
    %v1539 = vunpack.c.h.b16 %v1330
    %v1540 = vunpack.c.l.b16 %v1331
    %v1541 = vunpack.c.h.b16 %v1331
    %v1542 = vunpack.c.l.b16 %v1332
    %v1543 = vunpack.c.h.b16 %v1332
    %v1544 = vunpack.c.l.b16 %v1333
    %v1545 = vunpack.c.h.b16 %v1333
    %v1546 = vunpack.c.l.b16 %v1334
    %v1547 = vunpack.c.h.b16 %v1334
    %v1548 = vunpack.c.l.b16 %v1335
    %v1549 = vunpack.c.h.b16 %v1335
    %v1550 = vunpack.c.l.b16 %v1336
    %v1551 = vunpack.c.h.b16 %v1336
    %v1552 = vunpack.c.l.b16 %v1337
    %v1553 = vunpack.c.h.b16 %v1337
    %v1554 = vunpack.c.l.b16 %v1338
    %v1555 = vunpack.c.h.b16 %v1338
    %v1556 = vunpack.c.l.b16 %v1339
    %v1557 = vunpack.c.h.b16 %v1339
    %v1558 = vunpack.c.l.b16 %v1340
    %v1559 = vunpack.c.h.b16 %v1340
    %v1560 = vunpack.c.l.b16 %v1341
    %v1561 = vunpack.c.h.b16 %v1341
    %v1562 = vunpack.c.l.b16 %v1342
    %v1563 = vunpack.c.h.b16 %v1342
    %v1564 = vunpack.c.l.b16 %v1343
    %v1565 = vunpack.c.h.b16 %v1343
    %v1566 = vunpack.c.l.b16 %v1344
    %v1567 = vunpack.c.h.b16 %v1344
    %v1568 = vunpack.c.l.b16 %v1345
    %v1569 = vunpack.c.h.b16 %v1345
    %v1570 = vunpack.c.l.b16 %v1346
    %v1571 = vunpack.c.h.b16 %v1346
    %v1572 = vunpack.c.l.b16 %v1347
    %v1573 = vunpack.c.h.b16 %v1347
    %v1574 = vunpack.c.l.b16 %v1348
    %v1575 = vunpack.c.h.b16 %v1348
    %v1576 = vunpack.c.l.b16 %v1349
    %v1577 = vunpack.c.h.b16 %v1349
    %v1578 = vunpack.c.l.b16 %v1350
    %v1579 = vunpack.c.h.b16 %v1350
    %v1580 = vunpack.c.l.b16 %v1351
    %v1581 = vunpack.c.h.b16 %v1351
    %v1582 = vunpack.c.l.b16 %v1352
    %v1583 = vunpack.c.h.b16 %v1352
    %v1584 = vunpack.c.l.b16 %v1353
    %v1585 = vunpack.c.h.b16 %v1353
    %v1586 = vunpack.c.l.b16 %v1354
    %v1587 = vunpack.c.h.b16 %v1354
    %v1588 = vunpack.c.l.b16 %v1355
    %v1589 = vunpack.c.h.b16 %v1355
    %v1590 = vunpack.c.l.b16 %v1356
    %v1591 = vunpack.c.h.b16 %v1356
    %v1592 = vunpack.c.l.b16 %v1357
    %v1593 = vunpack.c.h.b16 %v1357
    %v1594 = vunpack.c.l.b16 %v1358
    %v1595 = vunpack.c.h.b16 %v1358
    %v1596 = vunpack.c.l.b16 %v1359
    %v1597 = vunpack.c.h.b16 %v1359
    %v1598 = vunpack.c.l.b16 %v1360
    %v1599 = vunpack.c.h.b16 %v1360
    %v1600 = vunpack.c.l.b16 %v1361
    %v1601 = vunpack.c.h.b16 %v1361
    %v1602 = vunpack.c.l.b16 %v1362
    %v1603 = vunpack.c.h.b16 %v1362
    %v1604 = vunpack.c.l.b16 %v1363
    %v1605 = vunpack.c.h.b16 %v1363
    %v1606 = vunpack.c.l.b16 %v1364
    %v1607 = vunpack.c.h.b16 %v1364
    %v1608 = vunpack.c.l.b16 %v1365
    %v1609 = vunpack.c.h.b16 %v1365
    %v1610 = vunpack.c.l.b16 %v1366
    %v1611 = vunpack.c.h.b16 %v1366
    %v1612 = vunpack.c.l.b16 %v1367
    %v1613 = vunpack.c.h.b16 %v1367
    %v1614 = vunpack.c.l.b16 %v1368
    %v1615 = vunpack.c.h.b16 %v1368
    %v1616 = vunpack.c.l.b16 %v1369
    %v1617 = vunpack.c.h.b16 %v1369
    %v1618 = vunpack.c.l.b16 %v1370
    %v1619 = vunpack.c.h.b16 %v1370
    %v1620 = vunpack.c.l.b16 %v1371
    %v1621 = vunpack.c.h.b16 %v1371
    %v1622 = vunpack.c.l.b16 %v1372
    %v1623 = vunpack.c.h.b16 %v1372
    %v1624 = vunpack.c.l.b16 %v1373
    %v1625 = vunpack.c.h.b16 %v1373
    %v1626 = vunpack.c.l.b16 %v1374
    %v1627 = vunpack.c.h.b16 %v1374
    %v1628 = vunpack.c.l.b16 %v1375
    %v1629 = vunpack.c.h.b16 %v1375
    %v1630 = vunpack.c.l.b16 %v1376
    %v1631 = vunpack.c.h.b16 %v1376
    %v1632 = vunpack.c.l.b16 %v1377
    %v1633 = vunpack.c.h.b16 %v1377
    %v1634 = vunpack.c.l.b16 %v1378
    %v1635 = vunpack.c.h.b16 %v1378
    %v1636 = vunpack.c.l.b16 %v1379
    %v1637 = vunpack.c.h.b16 %v1379
    %v1638 = vunpack.c.l.b16 %v1380
    %v1639 = vunpack.c.h.b16 %v1380
    %v1640 = vunpack.c.l.b16 %v1381
    %v1641 = vunpack.c.h.b16 %v1381
    %v1642 = vunpack.c.l.b16 %v1382
    %v1643 = vunpack.c.h.b16 %v1382
    %v1644 = vunpack.c.l.b16 %v1383
    %v1645 = vunpack.c.h.b16 %v1383
    %v1646 = vunpack.c.l.b16 %v1384
    %v1647 = vunpack.c.h.b16 %v1384
    %v1648 = vunpack.c.l.b16 %v1385
    %v1649 = vunpack.c.h.b16 %v1385
    %v1650 = vunpack.c.l.b16 %v1386
    %v1651 = vunpack.c.h.b16 %v1386
    %v1652 = vunpack.c.l.b16 %v1387
    %v1653 = vunpack.c.h.b16 %v1387
    %v1654 = vunpack.c.l.b16 %v1388
    %v1655 = vunpack.c.h.b16 %v1388
    %v1656 = vunpack.c.l.b16 %v1389
    %v1657 = vunpack.c.h.b16 %v1389
    %v1658 = vunpack.c.l.b16 %v1390
    %v1659 = vunpack.c.h.b16 %v1390
    %v1660 = vunpack.c.l.b16 %v1391
    %v1661 = vunpack.c.h.b16 %v1391
    %v1662 = vunpack.c.l.b16 %v1392
    %v1663 = vunpack.c.h.b16 %v1392
    %v1664 = vunpack.c.l.b16 %v1393
    %v1665 = vunpack.c.h.b16 %v1393
    %v1666 = vunpack.c.l.b16 %v1394
    %v1667 = vunpack.c.h.b16 %v1394
    %v1668 = vunpack.c.l.b16 %v1395
    %v1669 = vunpack.c.h.b16 %v1395
    %v1670 = vunpack.c.l.b16 %v1396
    %v1671 = vunpack.c.h.b16 %v1396
    %v1672 = vunpack.c.l.b16 %v1397
    %v1673 = vunpack.c.h.b16 %v1397
    %v1674 = vunpack.c.l.b16 %v1398
    %v1675 = vunpack.c.h.b16 %v1398
    %v1676 = vunpack.c.l.b16 %v1399
    %v1677 = vunpack.c.h.b16 %v1399
    %v1678 = vunpack.c.l.b16 %v1400
    %v1679 = vunpack.c.h.b16 %v1400
    %v1680 = vunpack.c.l.b16 %v1401
    %v1681 = vunpack.c.h.b16 %v1401
    %v1682 = vunpack.c.l.b16 %v1402
    %v1683 = vunpack.c.h.b16 %v1402
    %v1684 = vunpack.c.l.b16 %v1403
    %v1685 = vunpack.c.h.b16 %v1403
    %v1686 = vunpack.c.l.b16 %v1404
    %v1687 = vunpack.c.h.b16 %v1404
    %v1688 = vunpack.c.l.b16 %v1405
    %v1689 = vunpack.c.h.b16 %v1405
    %v1690 = vunpack.c.l.b16 %v1406
    %v1691 = vunpack.c.h.b16 %v1406
    %v1692 = vunpack.c.l.b16 %v1407
    %v1693 = vunpack.c.h.b16 %v1407
    %v1694 = vunpack.c.l.b16 %v1408
    %v1695 = vunpack.c.h.b16 %v1408
    %v1696 = vunpack.c.l.b16 %v1409
    %v1697 = vunpack.c.h.b16 %v1409
    %v1698 = vunpack.c.l.b16 %v1410
    %v1699 = vunpack.c.h.b16 %v1410
    %v1700 = vunpack.c.l.b16 %v1411
    %v1701 = vunpack.c.h.b16 %v1411
    %v1702 = vunpack.c.l.b16 %v1412
    %v1703 = vunpack.c.h.b16 %v1412
    %v1704 = vunpack.c.l.b16 %v1413
    %v1705 = vunpack.c.h.b16 %v1413
    %v1706 = vunpack.c.l.b16 %v1414
    %v1707 = vunpack.c.h.b16 %v1414
    %v1708 = vunpack.c.l.b16 %v1415
    %v1709 = vunpack.c.h.b16 %v1415
    %v1710 = vunpack.c.l.b16 %v1416
    %v1711 = vunpack.c.h.b16 %v1416
    %v1712 = vunpack.c.l.b16 %v1417
    %v1713 = vunpack.c.h.b16 %v1417
    %v1714 = vunpack.c.l.b16 %v1418
    %v1715 = vunpack.c.h.b16 %v1418
    %v1716 = vunpack.c.l.b16 %v1419
    %v1717 = vunpack.c.h.b16 %v1419
    %v1718 = vunpack.c.l.b16 %v1420
    %v1719 = vunpack.c.h.b16 %v1420
    %v1720 = vunpack.c.l.b16 %v1421
    %v1721 = vunpack.c.h.b16 %v1421
    %v1722 = vunpack.c.l.b16 %v1422
    %v1723 = vunpack.c.h.b16 %v1422
    %v1724 = vunpack.c.l.b16 %v1423
    %v1725 = vunpack.c.h.b16 %v1423
    %v1726 = vpack.c.b16 %v1540, %v1534
    %v1727 = vpack.c.b16 %v1541, %v1535
    %v1728 = vpack.c.b16 %v1542, %v1536
    %v1729 = vpack.c.b16 %v1543, %v1537
    %v1730 = vpack.c.b16 %v1544, %v1538
    %v1731 = vpack.c.b16 %v1545, %v1539
    %v1732 = vpack.c.b16 %v1552, %v1546
    %v1733 = vpack.c.b16 %v1553, %v1547
    %v1734 = vpack.c.b16 %v1554, %v1548
    %v1735 = vpack.c.b16 %v1555, %v1549
    %v1736 = vpack.c.b16 %v1556, %v1550
    %v1737 = vpack.c.b16 %v1557, %v1551
    %v1738 = vpack.c.b16 %v1564, %v1558
    %v1739 = vpack.c.b16 %v1565, %v1559
    %v1740 = vpack.c.b16 %v1566, %v1560
    %v1741 = vpack.c.b16 %v1567, %v1561
    %v1742 = vpack.c.b16 %v1568, %v1562
    %v1743 = vpack.c.b16 %v1569, %v1563
    %v1744 = vpack.c.b16 %v1576, %v1570
    %v1745 = vpack.c.b16 %v1577, %v1571
    %v1746 = vpack.c.b16 %v1578, %v1572
    %v1747 = vpack.c.b16 %v1579, %v1573
    %v1748 = vpack.c.b16 %v1580, %v1574
    %v1749 = vpack.c.b16 %v1581, %v1575
    %v1750 = vpack.c.b16 %v1588, %v1582
    %v1751 = vpack.c.b16 %v1589, %v1583
    %v1752 = vpack.c.b16 %v1590, %v1584
    %v1753 = vpack.c.b16 %v1591, %v1585
    %v1754 = vpack.c.b16 %v1592, %v1586
    %v1755 = vpack.c.b16 %v1593, %v1587
    %v1756 = vpack.c.b16 %v1600, %v1594
    %v1757 = vpack.c.b16 %v1601, %v1595
    %v1758 = vpack.c.b16 %v1602, %v1596
    %v1759 = vpack.c.b16 %v1603, %v1597
    %v1760 = vpack.c.b16 %v1604, %v1598
    %v1761 = vpack.c.b16 %v1605, %v1599
    %v1762 = vpack.c.b16 %v1612, %v1606
    %v1763 = vpack.c.b16 %v1613, %v1607
    %v1764 = vpack.c.b16 %v1614, %v1608
    %v1765 = vpack.c.b16 %v1615, %v1609
    %v1766 = vpack.c.b16 %v1616, %v1610
    %v1767 = vpack.c.b16 %v1617, %v1611
    %v1768 = vpack.c.b16 %v1624, %v1618
    %v1769 = vpack.c.b16 %v1625, %v1619
    %v1770 = vpack.c.b16 %v1626, %v1620
    %v1771 = vpack.c.b16 %v1627, %v1621
    %v1772 = vpack.c.b16 %v1628, %v1622
    %v1773 = vpack.c.b16 %v1629, %v1623
    %v1774 = vpack.c.b16 %v1636, %v1630
    %v1775 = vpack.c.b16 %v1637, %v1631
    %v1776 = vpack.c.b16 %v1638, %v1632
    %v1777 = vpack.c.b16 %v1639, %v1633
    %v1778 = vpack.c.b16 %v1640, %v1634
    %v1779 = vpack.c.b16 %v1641, %v1635
    %v1780 = vpack.c.b16 %v1648, %v1642
    %v1781 = vpack.c.b16 %v1649, %v1643
    %v1782 = vpack.c.b16 %v1650, %v1644
    %v1783 = vpack.c.b16 %v1651, %v1645
    %v1784 = vpack.c.b16 %v1652, %v1646
    %v1785 = vpack.c.b16 %v1653, %v1647
    %v1786 = vpack.c.b16 %v1660, %v1654
    %v1787 = vpack.c.b16 %v1661, %v1655
    %v1788 = vpack.c.b16 %v1662, %v1656
    %v1789 = vpack.c.b16 %v1663, %v1657
    %v1790 = vpack.c.b16 %v1664, %v1658
    %v1791 = vpack.c.b16 %v1665, %v1659
    %v1792 = vpack.c.b16 %v1672, %v1666
    %v1793 = vpack.c.b16 %v1673, %v1667
    %v1794 = vpack.c.b16 %v1674, %v1668
    %v1795 = vpack.c.b16 %v1675, %v1669
    %v1796 = vpack.c.b16 %v1676, %v1670
    %v1797 = vpack.c.b16 %v1677, %v1671
    %v1798 = vpack.c.b16 %v1684, %v1678
    %v1799 = vpack.c.b16 %v1685, %v1679
    %v1800 = vpack.c.b16 %v1686, %v1680
    %v1801 = vpack.c.b16 %v1687, %v1681
    %v1802 = vpack.c.b16 %v1688, %v1682
    %v1803 = vpack.c.b16 %v1689, %v1683
    %v1804 = vpack.c.b16 %v1696, %v1690
    %v1805 = vpack.c.b16 %v1697, %v1691
    %v1806 = vpack.c.b16 %v1698, %v1692
    %v1807 = vpack.c.b16 %v1699, %v1693
    %v1808 = vpack.c.b16 %v1700, %v1694
    %v1809 = vpack.c.b16 %v1701, %v1695
    %v1810 = vpack.c.b16 %v1708, %v1702
    %v1811 = vpack.c.b16 %v1709, %v1703
    %v1812 = vpack.c.b16 %v1710, %v1704
    %v1813 = vpack.c.b16 %v1711, %v1705
    %v1814 = vpack.c.b16 %v1712, %v1706
    %v1815 = vpack.c.b16 %v1713, %v1707
    %v1816 = vpack.c.b16 %v1720, %v1714
    %v1817 = vpack.c.b16 %v1721, %v1715
    %v1818 = vpack.c.b16 %v1722, %v1716
    %v1819 = vpack.c.b16 %v1723, %v1717
    %v1820 = vpack.c.b16 %v1724, %v1718
    %v1821 = vpack.c.b16 %v1725, %v1719
    %1918 = vmatpush.bf16.msra.mxu0 %v1768
    %1919 = vmatpush.bf16.msra.mxu0 %v1762
    %1920 = vmatpush.bf16.msra.mxu0 %v1756
    %1921 = vmatpush.bf16.msra.mxu0 %v1750
    %1922 = vmatpush.bf16.msra.mxu0 %v1744
    %1923 = vmatpush.bf16.msra.mxu0 %v1738
    %1924 = vmatpush.bf16.msra.mxu0 %v1732
    %1925 = vmatpush.bf16.msra.mxu0 %v1726
    %1926 = vmatmul.bf16.gmra.mxu0 %v1326
    %v1927 = vpop.f32.mrf.mxu0
    %v1928 = vadd.f32 %v1426, %v1927
    %v1929 = vpop.f32.mrf.mxu0
    %1930 = vdwg.mxu0
    %1931 = vmatpush.bf16.msra.mxu0 %v1816
    %1932 = vmatpush.bf16.msra.mxu0 %v1810
    %1933 = vmatpush.bf16.msra.mxu0 %v1804
    %1934 = vmatpush.bf16.msra.mxu0 %v1798
    %1935 = vmatpush.bf16.msra.mxu0 %v1792
    %1936 = vmatpush.bf16.msra.mxu0 %v1786
    %1937 = vmatpush.bf16.msra.mxu0 %v1780
    %1938 = vmatpush.bf16.msra.mxu0 %v1774
    %1939 = vmatmul.bf16.gmra.mxu0 %v1327
    %v1940 = vpop.f32.mrf.mxu0
    %v1941 = vadd.f32 %v1928, %v1940
    %v1942 = vpop.f32.mrf.mxu0
    %1943 = vdwg.mxu0
    %1944 = vmatpush.bf16.msra.mxu0 %v1769
    %1945 = vmatpush.bf16.msra.mxu0 %v1763
    %1946 = vmatpush.bf16.msra.mxu0 %v1757
    %1947 = vmatpush.bf16.msra.mxu0 %v1751
    %1948 = vmatpush.bf16.msra.mxu0 %v1745
    %1949 = vmatpush.bf16.msra.mxu0 %v1739
    %1950 = vmatpush.bf16.msra.mxu0 %v1733
    %1951 = vmatpush.bf16.msra.mxu0 %v1727
    %1952 = vmatmul.bf16.gmra.mxu0 %v1326
    %v1953 = vpop.f32.mrf.mxu0
    %v1954 = vadd.f32 %v1427, %v1953
    %v1955 = vpop.f32.mrf.mxu0
    %1956 = vdwg.mxu0
    %1957 = vmatpush.bf16.msra.mxu0 %v1817
    %1958 = vmatpush.bf16.msra.mxu0 %v1811
    %1959 = vmatpush.bf16.msra.mxu0 %v1805
    %1960 = vmatpush.bf16.msra.mxu0 %v1799
    %1961 = vmatpush.bf16.msra.mxu0 %v1793
    %1962 = vmatpush.bf16.msra.mxu0 %v1787
    %1963 = vmatpush.bf16.msra.mxu0 %v1781
    %1964 = vmatpush.bf16.msra.mxu0 %v1775
    %1965 = vmatmul.bf16.gmra.mxu0 %v1327
    %v1966 = vpop.f32.mrf.mxu0
    %v1967 = vadd.f32 %v1954, %v1966
    %v1968 = vpop.f32.mrf.mxu0
    %1969 = vdwg.mxu0
    %1970 = vmatpush.bf16.msra.mxu0 %v1770
    %1971 = vmatpush.bf16.msra.mxu0 %v1764
    %1972 = vmatpush.bf16.msra.mxu0 %v1758
    %1973 = vmatpush.bf16.msra.mxu0 %v1752
    %1974 = vmatpush.bf16.msra.mxu0 %v1746
    %1975 = vmatpush.bf16.msra.mxu0 %v1740
    %1976 = vmatpush.bf16.msra.mxu0 %v1734
    %1977 = vmatpush.bf16.msra.mxu0 %v1728
    %1978 = vmatmul.bf16.gmra.mxu0 %v1326
    %v1979 = vpop.f32.mrf.mxu0
    %v1980 = vadd.f32 %v1428, %v1979
    %v1981 = vpop.f32.mrf.mxu0
    %1982 = vdwg.mxu0
    %1983 = vmatpush.bf16.msra.mxu0 %v1818
    %1984 = vmatpush.bf16.msra.mxu0 %v1812
    %1985 = vmatpush.bf16.msra.mxu0 %v1806
    %1986 = vmatpush.bf16.msra.mxu0 %v1800
    %1987 = vmatpush.bf16.msra.mxu0 %v1794
    %1988 = vmatpush.bf16.msra.mxu0 %v1788
    %1989 = vmatpush.bf16.msra.mxu0 %v1782
    %1990 = vmatpush.bf16.msra.mxu0 %v1776
    %1991 = vmatmul.bf16.gmra.mxu0 %v1327
    %v1992 = vpop.f32.mrf.mxu0
    %v1993 = vadd.f32 %v1980, %v1992
    %v1994 = vpop.f32.mrf.mxu0
    %1995 = vdwg.mxu0
    %1996 = vmatpush.bf16.msra.mxu0 %v1771
    %1997 = vmatpush.bf16.msra.mxu0 %v1765
    %1998 = vmatpush.bf16.msra.mxu0 %v1759
    %1999 = vmatpush.bf16.msra.mxu0 %v1753
    %2000 = vmatpush.bf16.msra.mxu0 %v1747
    %2001 = vmatpush.bf16.msra.mxu0 %v1741
    %2002 = vmatpush.bf16.msra.mxu0 %v1735
    %2003 = vmatpush.bf16.msra.mxu0 %v1729
    %2004 = vmatmul.bf16.gmra.mxu0 %v1326
    %v2005 = vpop.f32.mrf.mxu0
    %v2006 = vadd.f32 %v1429, %v2005
    %v2007 = vpop.f32.mrf.mxu0
    %2008 = vdwg.mxu0
    %2009 = vmatpush.bf16.msra.mxu0 %v1819
    %2010 = vmatpush.bf16.msra.mxu0 %v1813
    %2011 = vmatpush.bf16.msra.mxu0 %v1807
    %2012 = vmatpush.bf16.msra.mxu0 %v1801
    %2013 = vmatpush.bf16.msra.mxu0 %v1795
    %2014 = vmatpush.bf16.msra.mxu0 %v1789
    %2015 = vmatpush.bf16.msra.mxu0 %v1783
    %2016 = vmatpush.bf16.msra.mxu0 %v1777
    %2017 = vmatmul.bf16.gmra.mxu0 %v1327
    %v2018 = vpop.f32.mrf.mxu0
    %v2019 = vadd.f32 %v2006, %v2018
    %v2020 = vpop.f32.mrf.mxu0
    %2021 = vdwg.mxu0
    %2022 = vmatpush.bf16.msra.mxu0 %v1772
    %2023 = vmatpush.bf16.msra.mxu0 %v1766
    %2024 = vmatpush.bf16.msra.mxu0 %v1760
    %2025 = vmatpush.bf16.msra.mxu0 %v1754
    %2026 = vmatpush.bf16.msra.mxu0 %v1748
    %2027 = vmatpush.bf16.msra.mxu0 %v1742
    %2028 = vmatpush.bf16.msra.mxu0 %v1736
    %2029 = vmatpush.bf16.msra.mxu0 %v1730
    %2030 = vmatmul.bf16.gmra.mxu0 %v1326
    %v2031 = vpop.f32.mrf.mxu0
    %v2032 = vadd.f32 %v1430, %v2031
    %v2033 = vpop.f32.mrf.mxu0
    %2034 = vdwg.mxu0
    %2035 = vmatpush.bf16.msra.mxu0 %v1820
    %2036 = vmatpush.bf16.msra.mxu0 %v1814
    %2037 = vmatpush.bf16.msra.mxu0 %v1808
    %2038 = vmatpush.bf16.msra.mxu0 %v1802
    %2039 = vmatpush.bf16.msra.mxu0 %v1796
    %2040 = vmatpush.bf16.msra.mxu0 %v1790
    %2041 = vmatpush.bf16.msra.mxu0 %v1784
    %2042 = vmatpush.bf16.msra.mxu0 %v1778
    %2043 = vmatmul.bf16.gmra.mxu0 %v1327
    %v2044 = vpop.f32.mrf.mxu0
    %v2045 = vadd.f32 %v2032, %v2044
    %v2046 = vpop.f32.mrf.mxu0
    %2047 = vdwg.mxu0
    %2048 = vmatpush.bf16.msra.mxu0 %v1773
    %2049 = vmatpush.bf16.msra.mxu0 %v1767
    %2050 = vmatpush.bf16.msra.mxu0 %v1761
    %2051 = vmatpush.bf16.msra.mxu0 %v1755
    %2052 = vmatpush.bf16.msra.mxu0 %v1749
    %2053 = vmatpush.bf16.msra.mxu0 %v1743
    %2054 = vmatpush.bf16.msra.mxu0 %v1737
    %2055 = vmatpush.bf16.msra.mxu0 %v1731
    %2056 = vmatmul.bf16.gmra.mxu0 %v1326
    %v2057 = vpop.f32.mrf.mxu0
    %v2058 = vadd.f32 %v1431, %v2057
    %v2059 = vpop.f32.mrf.mxu0
    %2060 = vdwg.mxu0
    %2061 = vmatpush.bf16.msra.mxu0 %v1821
    %2062 = vmatpush.bf16.msra.mxu0 %v1815
    %2063 = vmatpush.bf16.msra.mxu0 %v1809
    %2064 = vmatpush.bf16.msra.mxu0 %v1803
    %2065 = vmatpush.bf16.msra.mxu0 %v1797
    %2066 = vmatpush.bf16.msra.mxu0 %v1791
    %2067 = vmatpush.bf16.msra.mxu0 %v1785
    %2068 = vmatpush.bf16.msra.mxu0 %v1779
    %2069 = vmatmul.bf16.gmra.mxu0 %v1327
    %v2070 = vpop.f32.mrf.mxu0
    %v2071 = vadd.f32 %v2058, %v2070
    %v2072 = vpop.f32.mrf.mxu0
    %2073 = vdwg.mxu0
    %v2074 = vmul.f32 %v1941, 0.5
    %v2075 = vmul.f32 %v1967, 0.5
    %v2076 = vmul.f32 %v1993, 0.5
    %v2077 = vmul.f32 %v2019, 0.5
    %v2078 = vmul.f32 %v2045, 0.5
    %v2079 = vmul.f32 %v2071, 0.5
    %v2080 = vtanh.pop %v2074
    %v2081 = vtanh.pop %v2075
    %v2082 = vtanh.pop %v2076
    %v2083 = vtanh.pop %v2077
    %v2084 = vtanh.pop %v2078
    %v2085 = vtanh.pop %v2079
    %v2086 = vadd.f32 %v2080, 1.0
    %v2087 = vadd.f32 %v2081, 1.0
    %v2088 = vadd.f32 %v2082, 1.0
    %v2089 = vadd.f32 %v2083, 1.0
    %v2090 = vadd.f32 %v2084, 1.0
    %v2091 = vadd.f32 %v2085, 1.0
    %v2092 = vmul.f32 %v2086, 0.5
    %v2093 = vmul.f32 %v2087, 0.5
    %v2094 = vmul.f32 %v2088, 0.5
    %v2095 = vmul.f32 %v2089, 0.5
    %v2096 = vmul.f32 %v2090, 0.5
    %v2097 = vmul.f32 %v2091, 0.5
    %v2098 = vpack.c.bf16 %v2093, %v2092
    %v2099 = vpack.c.bf16 %v2095, %v2094
    %v2100 = vpack.c.bf16 %v2097, %v2096
    %v2104 = vrot.slane %v2098, 3
    %v2105 = vrot.slane %v2099, 6
    %v2106 = vrot.slane %v2099, 1
    %v2107 = vrot.slane %v2100, 4
    %v2108 = vrot.slane %v2100, 7
    %vm2109 = vcmask 1040384
    %v2112 = vsel %vm2109, %v2098, %v2104
    %vm2113 = vcmask 1041408
    %v2115 = vsel %vm2113, %v2112, %v2105
    %vm2116 = vcmask 1043459
    %v2119 = vsel %vm2116, %v2106, %v2107
    %vm2120 = vcmask 1044483
    %v2122 = vsel %vm2120, %v2119, %v2108
    %vm2123 = vcmask 1042432
    %v2124 = vsel %vm2123, %v2115, %v2122
    %vm2125 = vcmask 1041409
    %v2126 = vsel %vm2125, %v2098, %v2104
    %vm2127 = vcmask 1042433
    %v2128 = vsel %vm2127, %v2126, %v2105
    %vm2129 = vcmask 1044484
    %v2130 = vsel %vm2129, %v2106, %v2107
    %vm2131 = vcmask 1045508
    %v2132 = vsel %vm2131, %v2130, %v2108
    %vm2133 = vcmask 1043457
    %v2134 = vsel %vm2133, %v2128, %v2132
    %v2136 = vrot.slane %v2134, 1
    %vm2137 = vcmask 1042434
    %v2138 = vsel %vm2137, %v2098, %v2104
    %vm2139 = vcmask 1043458
    %v2140 = vsel %vm2139, %v2138, %v2105
    %vm2141 = vcmask 1045509
    %v2142 = vsel %vm2141, %v2106, %v2107
    %vm2143 = vcmask 1046533
    %v2144 = vsel %vm2143, %v2142, %v2108
    %vm2145 = vcmask 1044482
    %v2146 = vsel %vm2145, %v2140, %v2144
    %v2148 = vrot.slane %v2146, 2
    %v2149 = vsel %vm2116, %v2098, %v2104
    %v2150 = vsel %vm2120, %v2149, %v2105
    %vm2151 = vcmask 1046534
    %v2152 = vsel %vm2151, %v2106, %v2107
    %vm2153 = vcmask 1045504
    %v2154 = vsel %vm2153, %v2108, %v2152
    %vm2155 = vcmask 1045507
    %v2156 = vsel %vm2155, %v2150, %v2154
    %v2158 = vrot.slane %v2156, 3
    %vm2163 = vmor %vm2125, %vm2109
    %vm2164 = vmor %vm2137, %vm2163
    %vm2165 = vmor %vm2116, %vm2164
    %vm2166 = vmor %vm2129, %vm2165
    %vm2167 = vcmask 726021
    %vm2168 = vmor %vm2167, %vm2166
    %2169 = vst.msk [vmem:[#allocation9] sm:$0x3f] %vm2168, %v2124
    %2170 = vst.msk [vmem:[#allocation9 + $0x6] sm:$0x3f] %vm2168, %v2136
    %2171 = vst.msk [vmem:[#allocation9 + $0xc] sm:$0x3f] %vm2168, %v2148
    %2172 = vst.msk [vmem:[#allocation9 + $0x12] sm:$0x3f] %vm2168, %v2158
    %vm2173 = vcmask 261120
    %2174 = vst.msk [vmem:[#allocation10] sm:$0xff] %vm2173, %v1130
    %2175 = vst.msk [vmem:[#allocation12] sm:$0xff] %vm2173, %v1156
    // Predicated region
    $region54: #{vae_forward.1} parent=1 // pred_check
      _
    $region55: #{vae_forward.1} parent=1 // pred_check_branch
      %2177 = sbr.rel (0) target = $region57
    $region56: #{vae_forward.1} parent=1 // pred_region
      %2179 = vsyncadd [#allocation5], 288
      %s2180 = sshll.u32 [#allocation9], 4
      %s2181 = int_to_ptr.vmem [resolvable:$true] %s2180
      %s2182 = sshll.u32 %s10, 4
      %s2183 = int_to_ptr.hbm [resolvable:$true] %s2182
      %2188 = dma.vmem_to_hbm [thread:$0]  %s2181, 96, %s2183, [#allocation5], 96, 96, 6
    $region57: #{vae_forward.1} parent=1 // pred_fallthru
      _
    // Predicated region
    $region58: #{vae_forward.1} parent=1 // pred_check
      _
    $region59: #{vae_forward.1} parent=1 // pred_check_branch
      %2190 = sbr.rel (0) target = $region61
    $region60: #{vae_forward.1} parent=1 // pred_region
      %2192 = vsyncadd [#allocation11], 96
      %s2193 = sshll.u32 [#allocation10], 4
      %s2194 = int_to_ptr.vmem [resolvable:$true] %s2193
      %s2195 = sshll.u32 %s11, 4
      %s2196 = int_to_ptr.hbm [resolvable:$true] %s2195
      %2201 = dma.vmem_to_hbm [thread:$0]  %s2194, 32, %s2196, [#allocation11], 32, 32, 2
    $region61: #{vae_forward.1} parent=1 // pred_fallthru
      _
    // Predicated region
    $region62: #{vae_forward.1} parent=1 // pred_check
      _
    $region63: #{vae_forward.1} parent=1 // pred_check_branch
      %2203 = sbr.rel (0) target = $region65
    $region64: #{vae_forward.1} parent=1 // pred_region
      %2205 = vsyncadd [#allocation11], 96
      %s2206 = sshll.u32 [#allocation12], 4
      %s2207 = int_to_ptr.vmem [resolvable:$true] %s2206
      %s2208 = sshll.u32 %s12, 4
      %s2209 = int_to_ptr.hbm [resolvable:$true] %s2208
      %2214 = dma.vmem_to_hbm [thread:$0]  %s2207, 32, %s2209, [#allocation11], 32, 32, 2
    $region65: #{vae_forward.1} parent=1 // pred_fallthru
      _
    // Predicated region
    $region66: #{vae_forward.1} parent=1 // pred_check
      _
    $region67: #{vae_forward.1} parent=1 // pred_check_branch
      %2216 = sbr.rel (0) target = $region69
    $region68: #{vae_forward.1} parent=1 // pred_region
      %2218 = dma.done [#allocation5], 384
    $region69: #{vae_forward.1} parent=1 // pred_fallthru
      _
    // Predicated region
    $region70: #{vae_forward.1} parent=1 // pred_check
      _
    $region71: #{vae_forward.1} parent=1 // pred_check_branch
      %2220 = sbr.rel (0) target = $region73
    $region72: #{vae_forward.1} parent=1 // pred_region
      %2222 = dma.done [#allocation11], 128
    $region73: #{vae_forward.1} parent=1 // pred_fallthru
      _
    // Predicated region
    $region74: #{vae_forward.1} parent=1 // pred_check
      _
    $region75: #{vae_forward.1} parent=1 // pred_check_branch
      %2224 = sbr.rel (0) target = $region77
    $region76: #{vae_forward.1} parent=1 // pred_region
      %2226 = dma.done [#allocation11], 128
    $region77: #{vae_forward.1} parent=1 // pred_fallthru
      _
    %2227 = vsyncpa [#allocation4], 1
    %2228 = vsyncpa [#allocation7], 1
    %2229 = vsyncpa [#allocation5], 1
    %2230 = vsyncpa [#allocation11], 1

</llo_original>
